<compile_context>
chip_gen: v7x
topology: tpu7x:2x2x1
jax: 0.10.0
libtpu: 0.0.40
codegen_flags: <defaults>
</compile_context>

<pallas_src>
import jax
import jax.numpy as jnp
from jax.experimental import pallas as pl
from jax.experimental.pallas import tpu as pltpu

IN_FEATURES = 1024
HIDDEN = 512
NUM_CLASSES = 10
PADDED_CLASSES = 128     # lane-dense output width (multiple of 128)
TB_MAX = 2048            # batch tile upper bound (multiple of 256: fills MXU M dim)


def _round_up(n, m):
    return (n + m - 1) // m * m


def _pick_tile(b):
    """Batch-tile size.

    B <= 1024: one block covering the whole batch (block == full array dim is
    always legal -> no padding, no partial blocks; the tiny-batch path is
    latency bound anyway).
    B  > 1024: multiple of 256 (MXU fill, sublane-aligned), capped so the grid
    has >= ~4 steps (>= 2 per TensorCore on v7x) and never exceeds TB_MAX.
    """
    if b <= 1024:
        return b
    return min(TB_MAX, _round_up((b + 3) // 4, 256))


def _vmem_limit_bytes():
    """Generation-aware scoped-VMEM limit: ~75% of physical, capped at 96 MiB.

    v7x (64 MiB physical) -> 48 MiB; v5e/v6e (128 MiB) -> 96 MiB.
    """
    try:
        cap = pltpu.get_tpu_info().vmem_capacity_bytes
    except Exception:
        cap = 64 * 1024 * 1024
    return max(32 * 1024 * 1024, min(int(cap) * 3 // 4, 96 * 1024 * 1024))


def mlp_kernel(x_ref, w1_ref, b1_ref, w2_ref, b2_ref, w3_ref, b3_ref, o_ref):
    """Fused 3-layer MLP on one (TB, 1024) batch tile.

    x arrives as f32 and is cast to bf16 in-kernel (cheap VPU work hidden under
    MXU slack); matmuls run in bf16 with f32 accumulation; bias-add / ReLU run
    in f32 on the VPU; intermediates are cast back to bf16 before the next MXU
    pass.
    """
    x = x_ref[...].astype(jnp.bfloat16)                                     # (TB, 1024)
    h1 = jnp.dot(x, w1_ref[...], preferred_element_type=jnp.float32)       # (TB, 512) f32
    h1 = jnp.maximum(h1 + b1_ref[...], 0.0).astype(jnp.bfloat16)
    h2 = jnp.dot(h1, w2_ref[...], preferred_element_type=jnp.float32)      # (TB, 512) f32
    h2 = jnp.maximum(h2 + b2_ref[...], 0.0).astype(jnp.bfloat16)
    logits = jnp.dot(h2, w3_ref[...], preferred_element_type=jnp.float32)  # (TB, 128) f32
    o_ref[...] = (logits + b3_ref[...]).astype(o_ref.dtype)


def classifier_forward(x, kernel_params, num_classes=NUM_CLASSES):
    """x: (B, C, H, W) with C*H*W == 1024. Returns (B, num_classes) f32 logits."""
    w1, b1, w2, b2, w3p, b3p = kernel_params
    B = x.shape[0]
    x_flat = x.reshape(B, -1)                  # nn.Flatten(); stays f32 (cast is in-kernel)
    assert x_flat.shape[1] == IN_FEATURES

    tb = _pick_tile(B)
    grid = (pl.cdiv(B, tb),)                   # partial last block masked by Pallas

    flops = 2 * B * (IN_FEATURES * HIDDEN
                     + HIDDEN * HIDDEN
                     + HIDDEN * PADDED_CLASSES)
    bytes_accessed = (
        x_flat.size * x_flat.dtype.itemsize
        + sum(p.size * p.dtype.itemsize for p in kernel_params)
        + B * PADDED_CLASSES * 4
    )

    resident = dict(pipeline_mode=pl.Buffered(1))   # constant-index operands: single buffer

    out = pl.pallas_call(
        mlp_kernel,
        out_shape=jax.ShapeDtypeStruct((B, PADDED_CLASSES), jnp.float32),
        grid_spec=pltpu.PrefetchScalarGridSpec(
            num_scalar_prefetch=0,
            grid=grid,
            in_specs=[
                # Batch-tiled activations (double-buffered by the pipeline).
                pl.BlockSpec((tb, IN_FEATURES), lambda i: (i, 0)),
                # Weights / biases: constant index map -> DMA'd once, resident.
                pl.BlockSpec((IN_FEATURES, HIDDEN), lambda i: (0, 0), **resident),   # w1 bf16
                pl.BlockSpec((1, HIDDEN), lambda i: (0, 0), **resident),             # b1 f32
                pl.BlockSpec((HIDDEN, HIDDEN), lambda i: (0, 0), **resident),        # w2 bf16
                pl.BlockSpec((1, HIDDEN), lambda i: (0, 0), **resident),             # b2 f32
                pl.BlockSpec((HIDDEN, PADDED_CLASSES), lambda i: (0, 0), **resident),# w3 bf16
                pl.BlockSpec((1, PADDED_CLASSES), lambda i: (0, 0), **resident),     # b3 f32
            ],
            out_specs=pl.BlockSpec((tb, PADDED_CLASSES), lambda i: (i, 0)),
        ),
        compiler_params=pltpu.CompilerParams(
            dimension_semantics=("parallel",),       # shard batch axis across TCs (v7x)
            vmem_limit_bytes=_vmem_limit_bytes(),    # gen-aware: 48 MiB v7x, 96 MiB v5e/v6e
        ),
        cost_estimate=pl.CostEstimate(
            flops=flops, transcendentals=0, bytes_accessed=bytes_accessed),
    )(x_flat, w1, b1, w2, b2, w3p, b3p)

    # Drop the lane padding of the final layer.
    return out[:, :num_classes]


def init_params(key, num_classes=NUM_CLASSES):
    """f32 params matching PyTorch nn.Linear default init, stored (in, out)."""
    dims = [(IN_FEATURES, HIDDEN), (HIDDEN, HIDDEN), (HIDDEN, num_classes)]
    params = []
    for fan_in, fan_out in dims:
        key, kw, kb = jax.random.split(key, 3)
        bound = 1.0 / jnp.sqrt(fan_in)
        w = jax.random.uniform(kw, (fan_in, fan_out), jnp.float32, -bound, bound)
        b = jax.random.uniform(kb, (1, fan_out), jnp.float32, -bound, bound)
        params += [w, b]
    return tuple(params)


def prepare_kernel_params(params, num_classes=NUM_CLASSES):
    """Cast weights to bf16 and zero-pad the final layer to 128 output lanes."""
    w1, b1, w2, b2, w3, b3 = params
    pad = PADDED_CLASSES - num_classes
    w3p = jnp.pad(w3, ((0, 0), (0, pad)))
    b3p = jnp.pad(b3, ((0, 0), (0, pad)))
    return (
        w1.astype(jnp.bfloat16), b1.astype(jnp.float32),
        w2.astype(jnp.bfloat16), b2.astype(jnp.float32),
        w3p.astype(jnp.bfloat16), b3p.astype(jnp.float32),
    )


def reference_forward(x, params):
    """Plain-JAX f32 reference (matches the PyTorch module exactly)."""
    w1, b1, w2, b2, w3, b3 = params
    h = x.reshape(x.shape[0], -1)
    h = jnp.maximum(h @ w1 + b1, 0.0)
    h = jnp.maximum(h @ w2 + b2, 0.0)
    return h @ w3 + b3


if __name__ == "__main__":
    key = jax.random.PRNGKey(0)
    key, kx = jax.random.split(key)

    # NCHW input; 4 * 16 * 16 = 1024 features after flatten, batch = 2.
    x = jax.random.normal(kx, (2, 4, 16, 16), jnp.float32)
    params = init_params(key, num_classes=NUM_CLASSES)
    kernel_params = prepare_kernel_params(params, num_classes=NUM_CLASSES)

    logits = classifier_forward(x, kernel_params)
    jax.block_until_ready(logits)

    ref = reference_forward(x, params)
    assert logits.shape == (2, NUM_CLASSES)
    # bf16 matmul operands vs f32 reference -> loose but tight-enough tolerance.
    assert jnp.allclose(logits, ref, atol=5e-2, rtol=5e-2), float(
        jnp.max(jnp.abs(logits - ref)))

    print("KERNEL_OK")
</pallas_src>

<mosaic_0001>
module attributes {stable_mosaic.version = 11 : i64} {
  func.func @mlp_kernel(%arg0: i32, %arg1: memref<2x1024xf32, #tpu.memory_space<vmem>>, %arg2: memref<1024x512xbf16, #tpu.memory_space<vmem>>, %arg3: memref<1x512xf32, #tpu.memory_space<vmem>>, %arg4: memref<512x512xbf16, #tpu.memory_space<vmem>>, %arg5: memref<1x512xf32, #tpu.memory_space<vmem>>, %arg6: memref<512x128xbf16, #tpu.memory_space<vmem>>, %arg7: memref<1x128xf32, #tpu.memory_space<vmem>>, %arg8: memref<2x128xf32, #tpu.memory_space<vmem>>) attributes {dimension_semantics = [#tpu.dimension_semantics<parallel>], iteration_bounds = array<i64: 1>, scalar_prefetch = 0 : i64, scratch_operands = 0 : i64, tpu.core_type = #tpu.core_type<tc>, window_params = [{transform_indices = @transform_0, window_bounds = array<i64: 2, 1024>}, {pipeline_mode = #tpu.pipeline_mode<synchronous>, transform_indices = @transform_1, window_bounds = array<i64: 1024, 512>}, {pipeline_mode = #tpu.pipeline_mode<synchronous>, transform_indices = @transform_2, window_bounds = array<i64: 1, 512>}, {pipeline_mode = #tpu.pipeline_mode<synchronous>, transform_indices = @transform_3, window_bounds = array<i64: 512, 512>}, {pipeline_mode = #tpu.pipeline_mode<synchronous>, transform_indices = @transform_4, window_bounds = array<i64: 1, 512>}, {pipeline_mode = #tpu.pipeline_mode<synchronous>, transform_indices = @transform_5, window_bounds = array<i64: 512, 128>}, {pipeline_mode = #tpu.pipeline_mode<synchronous>, transform_indices = @transform_6, window_bounds = array<i64: 1, 128>}, {transform_indices = @transform_7, window_bounds = array<i64: 2, 128>}]} {
    %c0 = arith.constant 0 : index
    %c0_0 = arith.constant 0 : index
    %0 = vector.load %arg1[%c0, %c0_0] : memref<2x1024xf32, #tpu.memory_space<vmem>>, vector<2x1024xf32>
    %1 = arith.truncf %0 : vector<2x1024xf32> to vector<2x1024xbf16>
    %c0_1 = arith.constant 0 : index
    %c0_2 = arith.constant 0 : index
    %2 = vector.load %arg2[%c0_1, %c0_2] : memref<1024x512xbf16, #tpu.memory_space<vmem>>, vector<1024x512xbf16>
    %cst = arith.constant dense<0.000000e+00> : vector<2x512xf32>
    %3 = tpu.matmul %1, %2, %cst {dimension_numbers = #tpu.dot_dimension_numbers<[1], [0], [0], [1], [0, 0, 1, 1], [], []>} : vector<2x1024xbf16>, vector<1024x512xbf16>, vector<2x512xf32> -> vector<2x512xf32>
    %c0_3 = arith.constant 0 : index
    %c0_4 = arith.constant 0 : index
    %4 = vector.load %arg3[%c0_3, %c0_4] : memref<1x512xf32, #tpu.memory_space<vmem>>, vector<1x512xf32>
    %5 = vector.broadcast %4 : vector<1x512xf32> to vector<2x512xf32>
    %6 = arith.addf %3, %5 : vector<2x512xf32>
    %cst_5 = arith.constant 0.000000e+00 : f32
    %7 = vector.broadcast %cst_5 : f32 to vector<2x512xf32>
    %8 = arith.maximumf %6, %7 : vector<2x512xf32>
    %9 = arith.truncf %8 : vector<2x512xf32> to vector<2x512xbf16>
    %c0_6 = arith.constant 0 : index
    %c0_7 = arith.constant 0 : index
    %10 = vector.load %arg4[%c0_6, %c0_7] : memref<512x512xbf16, #tpu.memory_space<vmem>>, vector<512x512xbf16>
    %cst_8 = arith.constant dense<0.000000e+00> : vector<2x512xf32>
    %11 = tpu.matmul %9, %10, %cst_8 {dimension_numbers = #tpu.dot_dimension_numbers<[1], [0], [0], [1], [0, 0, 1, 1], [], []>} : vector<2x512xbf16>, vector<512x512xbf16>, vector<2x512xf32> -> vector<2x512xf32>
    %c0_9 = arith.constant 0 : index
    %c0_10 = arith.constant 0 : index
    %12 = vector.load %arg5[%c0_9, %c0_10] : memref<1x512xf32, #tpu.memory_space<vmem>>, vector<1x512xf32>
    %13 = vector.broadcast %12 : vector<1x512xf32> to vector<2x512xf32>
    %14 = arith.addf %11, %13 : vector<2x512xf32>
    %cst_11 = arith.constant 0.000000e+00 : f32
    %15 = vector.broadcast %cst_11 : f32 to vector<2x512xf32>
    %16 = arith.maximumf %14, %15 : vector<2x512xf32>
    %17 = arith.truncf %16 : vector<2x512xf32> to vector<2x512xbf16>
    %c0_12 = arith.constant 0 : index
    %c0_13 = arith.constant 0 : index
    %18 = vector.load %arg6[%c0_12, %c0_13] : memref<512x128xbf16, #tpu.memory_space<vmem>>, vector<512x128xbf16>
    %cst_14 = arith.constant dense<0.000000e+00> : vector<2x128xf32>
    %19 = tpu.matmul %17, %18, %cst_14 {dimension_numbers = #tpu.dot_dimension_numbers<[1], [0], [0], [1], [0, 0, 1, 1], [], []>} : vector<2x512xbf16>, vector<512x128xbf16>, vector<2x128xf32> -> vector<2x128xf32>
    %c0_15 = arith.constant 0 : index
    %c0_16 = arith.constant 0 : index
    %20 = vector.load %arg7[%c0_15, %c0_16] : memref<1x128xf32, #tpu.memory_space<vmem>>, vector<1x128xf32>
    %21 = vector.broadcast %20 : vector<1x128xf32> to vector<2x128xf32>
    %22 = arith.addf %19, %21 : vector<2x128xf32>
    %c0_17 = arith.constant 0 : index
    %c0_18 = arith.constant 0 : index
    %23 = vector.load %arg8[%c0_17, %c0_18] : memref<2x128xf32, #tpu.memory_space<vmem>>, vector<2x128xf32>
    tpu.vector_store %arg8[%c0_17, %c0_18], %22 {strides = array<i32>} : memref<2x128xf32, #tpu.memory_space<vmem>>, vector<2x128xf32>,
    return
  }
  func.func @transform_0(%arg0: i32) -> (i32, i32) {
    %c0_i32 = arith.constant 0 : i32
    %c0_i32_0 = arith.constant 0 : i32
    return %arg0, %c0_i32 : i32, i32
  }
  func.func @transform_1(%arg0: i32) -> (i32, i32) {
    %c0_i32 = arith.constant 0 : i32
    %c0_i32_0 = arith.constant 0 : i32
    %c0_i32_1 = arith.constant 0 : i32
    return %c0_i32, %c0_i32_0 : i32, i32
  }
  func.func @transform_2(%arg0: i32) -> (i32, i32) {
    %c0_i32 = arith.constant 0 : i32
    %c0_i32_0 = arith.constant 0 : i32
    %c0_i32_1 = arith.constant 0 : i32
    return %c0_i32, %c0_i32_0 : i32, i32
  }
  func.func @transform_3(%arg0: i32) -> (i32, i32) {
    %c0_i32 = arith.constant 0 : i32
    %c0_i32_0 = arith.constant 0 : i32
    %c0_i32_1 = arith.constant 0 : i32
    return %c0_i32, %c0_i32_0 : i32, i32
  }
  func.func @transform_4(%arg0: i32) -> (i32, i32) {
    %c0_i32 = arith.constant 0 : i32
    %c0_i32_0 = arith.constant 0 : i32
    %c0_i32_1 = arith.constant 0 : i32
    return %c0_i32, %c0_i32_0 : i32, i32
  }
  func.func @transform_5(%arg0: i32) -> (i32, i32) {
    %c0_i32 = arith.constant 0 : i32
    %c0_i32_0 = arith.constant 0 : i32
    %c0_i32_1 = arith.constant 0 : i32
    return %c0_i32, %c0_i32_0 : i32, i32
  }
  func.func @transform_6(%arg0: i32) -> (i32, i32) {
    %c0_i32 = arith.constant 0 : i32
    %c0_i32_0 = arith.constant 0 : i32
    %c0_i32_1 = arith.constant 0 : i32
    return %c0_i32, %c0_i32_0 : i32, i32
  }
  func.func @transform_7(%arg0: i32) -> (i32, i32) {
    %c0_i32 = arith.constant 0 : i32
    %c0_i32_0 = arith.constant 0 : i32
    return %arg0, %c0_i32 : i32, i32
  }
}

</mosaic_0001>

<llo_original>
// kernel: tpu_custom_call.1
$region0: #{tpu_custom_call.1}
  #allocation0 [shape = 'u32[]', space=smem, size = 0x4, offset = 0x4, fixed_abs, tag = 'smem constant byte address 0x4 - core index']
  #allocation1 [shape = 'u32[144,128]{1,0:T(1,128)}', space=vmem, size = 0x12000, scoped, tag = 'internal scratch']
  %s0 = inlined_call_operand.hbm [shape: f32[2,1024], index: 0, kind: input, shape index: {}]
  %s1 = inlined_call_operand.hbm [shape: bf16[1024,512], index: 1, kind: input, shape index: {}]
  %s2 = inlined_call_operand.vmem [shape: f32[1,512], index: 2, kind: input, shape index: {}]
  %s3 = inlined_call_operand.hbm [shape: bf16[512,512], index: 3, kind: input, shape index: {}]
  %s4 = inlined_call_operand.vmem [shape: f32[1,512], index: 4, kind: input, shape index: {}]
  %s5 = inlined_call_operand.hbm [shape: bf16[512,128], index: 5, kind: input, shape index: {}]
  %s6 = inlined_call_operand.vmem [shape: f32[1,128], index: 6, kind: input, shape index: {}]
  %s7 = inlined_call_operand.hbm [shape: f32[2,128], index: 7, kind: output, shape index: {}]
  %s8 = sld [smem:[#allocation0]]
  $region54: #{tpu_custom_call.1} parent=0
    _
  %s10 = ssub.s32 1, %s8
  %s11 = scalar_select 0, %s10, %s8
  $region1: #{tpu_custom_call.1} parent=0
    #allocation2 [shape = 'u8[8192]{0}', space=vmem, size = 0x2000, scoped, tag = 'input window, operand 0, single buffered']
    #allocation3 [shape = 's32[1]{0}', space=sflag, size = 0x4, scoped, tag = 'scoped memory for tpu_custom_call.1']
    #allocation4 [shape = 's32[1]{0}', space=sflag, size = 0x4, scoped, tag = 'scoped memory for tpu_custom_call.1']
    #allocation5 [shape = 'u8[1048576]{0}', space=vmem, size = 0x100000, scoped, tag = 'input window, operand 1, single buffered']
    #allocation6 [shape = 's32[1]{0}', space=sflag, size = 0x4, scoped, tag = 'scoped memory for tpu_custom_call.1']
    #allocation7 [shape = 'u8[524288]{0}', space=vmem, size = 0x80000, scoped, tag = 'input window, operand 3, single buffered']
    #allocation8 [shape = 'u8[131072]{0}', space=vmem, size = 0x20000, scoped, tag = 'input window, operand 5, single buffered']
    #allocation9 [shape = 's32[1]{0}', space=sflag, size = 0x4, scoped, tag = 'scoped memory for tpu_custom_call.1']
    #allocation10 [shape = 'u8[1024]{0}', space=vmem, size = 0x400, scoped, tag = 'output window, operand 0, single buffered']
    %12 = vsyncpa [#allocation3], 0
    %13 = vsyncpa [#allocation6], 0
    %14 = vsyncpa [#allocation9], 0
    %15 = vsyncpa [#allocation4], 0
    // Predicated region
    $region2: #{tpu_custom_call.1} parent=1 // pred_check
      _
    $region3: #{tpu_custom_call.1} parent=1 // pred_check_branch
      %17 = sbr.rel (0) target = $region5
    $region4: #{tpu_custom_call.1} parent=1 // pred_region
      %s19 = ssub.s32 256, 256
      %20 = vsyncadd [#allocation3], %s19
      %s22 = sshll.u32 [#allocation2], 4
      %s23 = int_to_ptr.vmem [resolvable:$true] %s22
      %25 = dma.hbm_to_vmem [thread:$0]  %s0, 256, %s23, [#allocation3]
    $region5: #{tpu_custom_call.1} parent=1 // pred_fallthru
      _
    // Predicated region
    $region6: #{tpu_custom_call.1} parent=1 // pred_check
      _
    $region7: #{tpu_custom_call.1} parent=1 // pred_check_branch
      %27 = sbr.rel (0) target = $region9
    $region8: #{tpu_custom_call.1} parent=1 // pred_region
      %s29 = ssub.s32 32768, 32768
      %30 = vsyncadd [#allocation6], %s29
      %s31 = sshll.u32 [#allocation5], 4
      %s32 = int_to_ptr.vmem [resolvable:$true] %s31
      %37 = dma.hbm_to_vmem [thread:$0]  %s1, 32768, %s32, [#allocation6], 256, 256, 16
    $region9: #{tpu_custom_call.1} parent=1 // pred_fallthru
      _
    // Predicated region
    $region10: #{tpu_custom_call.1} parent=1 // pred_check
      _
    $region11: #{tpu_custom_call.1} parent=1 // pred_check_branch
      %39 = sbr.rel (0) target = $region13
    $region12: #{tpu_custom_call.1} parent=1 // pred_region
      _
    $region13: #{tpu_custom_call.1} parent=1 // pred_fallthru
      _
    // Predicated region
    $region14: #{tpu_custom_call.1} parent=1 // pred_check
      _
    $region15: #{tpu_custom_call.1} parent=1 // pred_check_branch
      %41 = sbr.rel (0) target = $region17
    $region16: #{tpu_custom_call.1} parent=1 // pred_region
      %s43 = ssub.s32 16384, 16384
      %44 = vsyncadd [#allocation6], %s43
      %s45 = sshll.u32 [#allocation7], 4
      %s46 = int_to_ptr.vmem [resolvable:$true] %s45
      %51 = dma.hbm_to_vmem [thread:$0]  %s3, 16384, %s46, [#allocation6], 256, 256, 16
    $region17: #{tpu_custom_call.1} parent=1 // pred_fallthru
      _
    // Predicated region
    $region18: #{tpu_custom_call.1} parent=1 // pred_check
      _
    $region19: #{tpu_custom_call.1} parent=1 // pred_check_branch
      %53 = sbr.rel (0) target = $region21
    $region20: #{tpu_custom_call.1} parent=1 // pred_region
      _
    $region21: #{tpu_custom_call.1} parent=1 // pred_fallthru
      _
    // Predicated region
    $region22: #{tpu_custom_call.1} parent=1 // pred_check
      _
    $region23: #{tpu_custom_call.1} parent=1 // pred_check_branch
      %55 = sbr.rel (0) target = $region25
    $region24: #{tpu_custom_call.1} parent=1 // pred_region
      %s57 = ssub.s32 4096, 4096
      %58 = vsyncadd [#allocation9], %s57
      %s59 = sshll.u32 [#allocation8], 4
      %s60 = int_to_ptr.vmem [resolvable:$true] %s59
      %65 = dma.hbm_to_vmem [thread:$0]  %s5, 4096, %s60, [#allocation9], 64, 64, 4
    $region25: #{tpu_custom_call.1} parent=1 // pred_fallthru
      _
    // Predicated region
    $region26: #{tpu_custom_call.1} parent=1 // pred_check
      _
    $region27: #{tpu_custom_call.1} parent=1 // pred_check_branch
      %67 = sbr.rel (0) target = $region29
    $region28: #{tpu_custom_call.1} parent=1 // pred_region
      _
    $region29: #{tpu_custom_call.1} parent=1 // pred_fallthru
      _
    // Predicated region
    $region30: #{tpu_custom_call.1} parent=1 // pred_check
      _
    $region31: #{tpu_custom_call.1} parent=1 // pred_check_branch
      %69 = sbr.rel (0) target = $region33
    $region32: #{tpu_custom_call.1} parent=1 // pred_region
      %70 = dma.done [#allocation3], 256
    $region33: #{tpu_custom_call.1} parent=1 // pred_fallthru
      _
    // Predicated region
    $region34: #{tpu_custom_call.1} parent=1 // pred_check
      _
    $region35: #{tpu_custom_call.1} parent=1 // pred_check_branch
      %72 = sbr.rel (0) target = $region37
    $region36: #{tpu_custom_call.1} parent=1 // pred_region
      %73 = dma.done [#allocation6], 32768
    $region37: #{tpu_custom_call.1} parent=1 // pred_fallthru
      _
    // Predicated region
    $region38: #{tpu_custom_call.1} parent=1 // pred_check
      _
    $region39: #{tpu_custom_call.1} parent=1 // pred_check_branch
      %75 = sbr.rel (0) target = $region41
    $region40: #{tpu_custom_call.1} parent=1 // pred_region
      %76 = dma.done [#allocation6], 16384
    $region41: #{tpu_custom_call.1} parent=1 // pred_fallthru
      _
    // Predicated region
    $region42: #{tpu_custom_call.1} parent=1 // pred_check
      _
    $region43: #{tpu_custom_call.1} parent=1 // pred_check_branch
      %78 = sbr.rel (0) target = $region45
    $region44: #{tpu_custom_call.1} parent=1 // pred_region
      %79 = dma.done [#allocation9], 4096
    $region45: #{tpu_custom_call.1} parent=1 // pred_fallthru
      _
    %v81 = vld [vmem:[#allocation2] sm:$0xff]
    %v82 = vld [vmem:[#allocation2 + $0x8] sm:$0xff]
    %v85 = vcombine.high %v81, %v81
    %v87 = vunpack.c.l.s4 1983009808
    %v88 = vunpack.c.0.s8 %v87
    %v89 = vlaneseq
    %v90 = vshrl.u32 %v89, 7
    %v91 = vsub.s32 %v88, %v90
    %v92 = vrot.slane %v81, %v91
    %v94 = vunpack.c.l.s4 1983009808
    %v95 = vunpack.c.0.s8 %v94
    %v96 = vlaneseq
    %v97 = vshrl.u32 %v96, 7
    %v98 = vsub.s32 %v95, %v97
    %v99 = vrot.slane %v85, %v98
    %v100 = vcombine.high %v92, %v92
    %v101 = vcombine.high %v99, %v99
    %v102 = vcombine.high %v82, %v82
    %v104 = vunpack.c.l.s4 1983009808
    %v105 = vunpack.c.0.s8 %v104
    %v106 = vlaneseq
    %v107 = vshrl.u32 %v106, 7
    %v108 = vsub.s32 %v105, %v107
    %v109 = vrot.slane %v82, %v108
    %v111 = vunpack.c.l.s4 1983009808
    %v112 = vunpack.c.0.s8 %v111
    %v113 = vlaneseq
    %v114 = vshrl.u32 %v113, 7
    %v115 = vsub.s32 %v112, %v114
    %v116 = vrot.slane %v102, %v115
    %v117 = vcombine.high %v109, %v109
    %v118 = vcombine.high %v116, %v116
    %v127 = vpack.c.bf16 %v92, %v92
    %v128 = vpack.c.bf16 %v100, %v100
    %v129 = vpack.c.bf16 %v99, %v99
    %v130 = vpack.c.bf16 %v101, %v101
    %v131 = vpack.c.bf16 %v109, %v109
    %v132 = vpack.c.bf16 %v117, %v117
    %v133 = vpack.c.bf16 %v116, %v116
    %v134 = vpack.c.bf16 %v118, %v118
    %v135 = vld [vmem:[#allocation5] sm:$0xff]
    %v136 = vld [vmem:[#allocation5 + $0x8] sm:$0xff]
    %v137 = vld [vmem:[#allocation5 + $0x10] sm:$0xff]
    %v138 = vld [vmem:[#allocation5 + $0x18] sm:$0xff]
    %v139 = vld [vmem:[#allocation5 + $0x20] sm:$0xff]
    %v140 = vld [vmem:[#allocation5 + $0x28] sm:$0xff]
    %v141 = vld [vmem:[#allocation5 + $0x30] sm:$0xff]
    %v142 = vld [vmem:[#allocation5 + $0x38] sm:$0xff]
    %v143 = vld [vmem:[#allocation5 + $0x40] sm:$0xff]
    %v144 = vld [vmem:[#allocation5 + $0x48] sm:$0xff]
    %v145 = vld [vmem:[#allocation5 + $0x50] sm:$0xff]
    %v146 = vld [vmem:[#allocation5 + $0x58] sm:$0xff]
    %v147 = vld [vmem:[#allocation5 + $0x60] sm:$0xff]
    %v148 = vld [vmem:[#allocation5 + $0x68] sm:$0xff]
    %v149 = vld [vmem:[#allocation5 + $0x70] sm:$0xff]
    %v150 = vld [vmem:[#allocation5 + $0x78] sm:$0xff]
    %v151 = vld [vmem:[#allocation5 + $0x80] sm:$0xff]
    %v152 = vld [vmem:[#allocation5 + $0x88] sm:$0xff]
    %v153 = vld [vmem:[#allocation5 + $0x90] sm:$0xff]
    %v154 = vld [vmem:[#allocation5 + $0x98] sm:$0xff]
    %v155 = vld [vmem:[#allocation5 + $0xa0] sm:$0xff]
    %v156 = vld [vmem:[#allocation5 + $0xa8] sm:$0xff]
    %v157 = vld [vmem:[#allocation5 + $0xb0] sm:$0xff]
    %v158 = vld [vmem:[#allocation5 + $0xb8] sm:$0xff]
    %v159 = vld [vmem:[#allocation5 + $0xc0] sm:$0xff]
    %v160 = vld [vmem:[#allocation5 + $0xc8] sm:$0xff]
    %v161 = vld [vmem:[#allocation5 + $0xd0] sm:$0xff]
    %v162 = vld [vmem:[#allocation5 + $0xd8] sm:$0xff]
    %v163 = vld [vmem:[#allocation5 + $0xe0] sm:$0xff]
    %v164 = vld [vmem:[#allocation5 + $0xe8] sm:$0xff]
    %v165 = vld [vmem:[#allocation5 + $0xf0] sm:$0xff]
    %v166 = vld [vmem:[#allocation5 + $0xf8] sm:$0xff]
    %v167 = vld [vmem:[#allocation5 + $0x100] sm:$0xff]
    %v168 = vld [vmem:[#allocation5 + $0x108] sm:$0xff]
    %v169 = vld [vmem:[#allocation5 + $0x110] sm:$0xff]
    %v170 = vld [vmem:[#allocation5 + $0x118] sm:$0xff]
    %v171 = vld [vmem:[#allocation5 + $0x120] sm:$0xff]
    %v172 = vld [vmem:[#allocation5 + $0x128] sm:$0xff]
    %v173 = vld [vmem:[#allocation5 + $0x130] sm:$0xff]
    %v174 = vld [vmem:[#allocation5 + $0x138] sm:$0xff]
    %v175 = vld [vmem:[#allocation5 + $0x140] sm:$0xff]
    %v176 = vld [vmem:[#allocation5 + $0x148] sm:$0xff]
    %v177 = vld [vmem:[#allocation5 + $0x150] sm:$0xff]
    %v178 = vld [vmem:[#allocation5 + $0x158] sm:$0xff]
    %v179 = vld [vmem:[#allocation5 + $0x160] sm:$0xff]
    %v180 = vld [vmem:[#allocation5 + $0x168] sm:$0xff]
    %v181 = vld [vmem:[#allocation5 + $0x170] sm:$0xff]
    %v182 = vld [vmem:[#allocation5 + $0x178] sm:$0xff]
    %v183 = vld [vmem:[#allocation5 + $0x180] sm:$0xff]
    %v184 = vld [vmem:[#allocation5 + $0x188] sm:$0xff]
    %v185 = vld [vmem:[#allocation5 + $0x190] sm:$0xff]
    %v186 = vld [vmem:[#allocation5 + $0x198] sm:$0xff]
    %v187 = vld [vmem:[#allocation5 + $0x1a0] sm:$0xff]
    %v188 = vld [vmem:[#allocation5 + $0x1a8] sm:$0xff]
    %v189 = vld [vmem:[#allocation5 + $0x1b0] sm:$0xff]
    %v190 = vld [vmem:[#allocation5 + $0x1b8] sm:$0xff]
    %v191 = vld [vmem:[#allocation5 + $0x1c0] sm:$0xff]
    %v192 = vld [vmem:[#allocation5 + $0x1c8] sm:$0xff]
    %v193 = vld [vmem:[#allocation5 + $0x1d0] sm:$0xff]
    %v194 = vld [vmem:[#allocation5 + $0x1d8] sm:$0xff]
    %v195 = vld [vmem:[#allocation5 + $0x1e0] sm:$0xff]
    %v196 = vld [vmem:[#allocation5 + $0x1e8] sm:$0xff]
    %v197 = vld [vmem:[#allocation5 + $0x1f0] sm:$0xff]
    %v198 = vld [vmem:[#allocation5 + $0x1f8] sm:$0xff]
    %v199 = vld [vmem:[#allocation5 + $0x200] sm:$0xff]
    %v200 = vld [vmem:[#allocation5 + $0x208] sm:$0xff]
    %v201 = vld [vmem:[#allocation5 + $0x210] sm:$0xff]
    %v202 = vld [vmem:[#allocation5 + $0x218] sm:$0xff]
    %v203 = vld [vmem:[#allocation5 + $0x220] sm:$0xff]
    %v204 = vld [vmem:[#allocation5 + $0x228] sm:$0xff]
    %v205 = vld [vmem:[#allocation5 + $0x230] sm:$0xff]
    %v206 = vld [vmem:[#allocation5 + $0x238] sm:$0xff]
    %v207 = vld [vmem:[#allocation5 + $0x240] sm:$0xff]
    %v208 = vld [vmem:[#allocation5 + $0x248] sm:$0xff]
    %v209 = vld [vmem:[#allocation5 + $0x250] sm:$0xff]
    %v210 = vld [vmem:[#allocation5 + $0x258] sm:$0xff]
    %v211 = vld [vmem:[#allocation5 + $0x260] sm:$0xff]
    %v212 = vld [vmem:[#allocation5 + $0x268] sm:$0xff]
    %v213 = vld [vmem:[#allocation5 + $0x270] sm:$0xff]
    %v214 = vld [vmem:[#allocation5 + $0x278] sm:$0xff]
    %v215 = vld [vmem:[#allocation5 + $0x280] sm:$0xff]
    %v216 = vld [vmem:[#allocation5 + $0x288] sm:$0xff]
    %v217 = vld [vmem:[#allocation5 + $0x290] sm:$0xff]
    %v218 = vld [vmem:[#allocation5 + $0x298] sm:$0xff]
    %v219 = vld [vmem:[#allocation5 + $0x2a0] sm:$0xff]
    %v220 = vld [vmem:[#allocation5 + $0x2a8] sm:$0xff]
    %v221 = vld [vmem:[#allocation5 + $0x2b0] sm:$0xff]
    %v222 = vld [vmem:[#allocation5 + $0x2b8] sm:$0xff]
    %v223 = vld [vmem:[#allocation5 + $0x2c0] sm:$0xff]
    %v224 = vld [vmem:[#allocation5 + $0x2c8] sm:$0xff]
    %v225 = vld [vmem:[#allocation5 + $0x2d0] sm:$0xff]
    %v226 = vld [vmem:[#allocation5 + $0x2d8] sm:$0xff]
    %v227 = vld [vmem:[#allocation5 + $0x2e0] sm:$0xff]
    %v228 = vld [vmem:[#allocation5 + $0x2e8] sm:$0xff]
    %v229 = vld [vmem:[#allocation5 + $0x2f0] sm:$0xff]
    %v230 = vld [vmem:[#allocation5 + $0x2f8] sm:$0xff]
    %v231 = vld [vmem:[#allocation5 + $0x300] sm:$0xff]
    %v232 = vld [vmem:[#allocation5 + $0x308] sm:$0xff]
    %v233 = vld [vmem:[#allocation5 + $0x310] sm:$0xff]
    %v234 = vld [vmem:[#allocation5 + $0x318] sm:$0xff]
    %v235 = vld [vmem:[#allocation5 + $0x320] sm:$0xff]
    %v236 = vld [vmem:[#allocation5 + $0x328] sm:$0xff]
    %v237 = vld [vmem:[#allocation5 + $0x330] sm:$0xff]
    %v238 = vld [vmem:[#allocation5 + $0x338] sm:$0xff]
    %v239 = vld [vmem:[#allocation5 + $0x340] sm:$0xff]
    %v240 = vld [vmem:[#allocation5 + $0x348] sm:$0xff]
    %v241 = vld [vmem:[#allocation5 + $0x350] sm:$0xff]
    %v242 = vld [vmem:[#allocation5 + $0x358] sm:$0xff]
    %v243 = vld [vmem:[#allocation5 + $0x360] sm:$0xff]
    %v244 = vld [vmem:[#allocation5 + $0x368] sm:$0xff]
    %v245 = vld [vmem:[#allocation5 + $0x370] sm:$0xff]
    %v246 = vld [vmem:[#allocation5 + $0x378] sm:$0xff]
    %v247 = vld [vmem:[#allocation5 + $0x380] sm:$0xff]
    %v248 = vld [vmem:[#allocation5 + $0x388] sm:$0xff]
    %v249 = vld [vmem:[#allocation5 + $0x390] sm:$0xff]
    %v250 = vld [vmem:[#allocation5 + $0x398] sm:$0xff]
    %v251 = vld [vmem:[#allocation5 + $0x3a0] sm:$0xff]
    %v252 = vld [vmem:[#allocation5 + $0x3a8] sm:$0xff]
    %v253 = vld [vmem:[#allocation5 + $0x3b0] sm:$0xff]
    %v254 = vld [vmem:[#allocation5 + $0x3b8] sm:$0xff]
    %v255 = vld [vmem:[#allocation5 + $0x3c0] sm:$0xff]
    %v256 = vld [vmem:[#allocation5 + $0x3c8] sm:$0xff]
    %v257 = vld [vmem:[#allocation5 + $0x3d0] sm:$0xff]
    %v258 = vld [vmem:[#allocation5 + $0x3d8] sm:$0xff]
    %v259 = vld [vmem:[#allocation5 + $0x3e0] sm:$0xff]
    %v260 = vld [vmem:[#allocation5 + $0x3e8] sm:$0xff]
    %v261 = vld [vmem:[#allocation5 + $0x3f0] sm:$0xff]
    %v262 = vld [vmem:[#allocation5 + $0x3f8] sm:$0xff]
    %v263 = vld [vmem:[#allocation5 + $0x400] sm:$0xff]
    %v264 = vld [vmem:[#allocation5 + $0x408] sm:$0xff]
    %v265 = vld [vmem:[#allocation5 + $0x410] sm:$0xff]
    %v266 = vld [vmem:[#allocation5 + $0x418] sm:$0xff]
    %v267 = vld [vmem:[#allocation5 + $0x420] sm:$0xff]
    %v268 = vld [vmem:[#allocation5 + $0x428] sm:$0xff]
    %v269 = vld [vmem:[#allocation5 + $0x430] sm:$0xff]
    %v270 = vld [vmem:[#allocation5 + $0x438] sm:$0xff]
    %v271 = vld [vmem:[#allocation5 + $0x440] sm:$0xff]
    %v272 = vld [vmem:[#allocation5 + $0x448] sm:$0xff]
    %v273 = vld [vmem:[#allocation5 + $0x450] sm:$0xff]
    %v274 = vld [vmem:[#allocation5 + $0x458] sm:$0xff]
    %v275 = vld [vmem:[#allocation5 + $0x460] sm:$0xff]
    %v276 = vld [vmem:[#allocation5 + $0x468] sm:$0xff]
    %v277 = vld [vmem:[#allocation5 + $0x470] sm:$0xff]
    %v278 = vld [vmem:[#allocation5 + $0x478] sm:$0xff]
    %v279 = vld [vmem:[#allocation5 + $0x480] sm:$0xff]
    %v280 = vld [vmem:[#allocation5 + $0x488] sm:$0xff]
    %v281 = vld [vmem:[#allocation5 + $0x490] sm:$0xff]
    %v282 = vld [vmem:[#allocation5 + $0x498] sm:$0xff]
    %v283 = vld [vmem:[#allocation5 + $0x4a0] sm:$0xff]
    %v284 = vld [vmem:[#allocation5 + $0x4a8] sm:$0xff]
    %v285 = vld [vmem:[#allocation5 + $0x4b0] sm:$0xff]
    %v286 = vld [vmem:[#allocation5 + $0x4b8] sm:$0xff]
    %v287 = vld [vmem:[#allocation5 + $0x4c0] sm:$0xff]
    %v288 = vld [vmem:[#allocation5 + $0x4c8] sm:$0xff]
    %v289 = vld [vmem:[#allocation5 + $0x4d0] sm:$0xff]
    %v290 = vld [vmem:[#allocation5 + $0x4d8] sm:$0xff]
    %v291 = vld [vmem:[#allocation5 + $0x4e0] sm:$0xff]
    %v292 = vld [vmem:[#allocation5 + $0x4e8] sm:$0xff]
    %v293 = vld [vmem:[#allocation5 + $0x4f0] sm:$0xff]
    %v294 = vld [vmem:[#allocation5 + $0x4f8] sm:$0xff]
    %v295 = vld [vmem:[#allocation5 + $0x500] sm:$0xff]
    %v296 = vld [vmem:[#allocation5 + $0x508] sm:$0xff]
    %v297 = vld [vmem:[#allocation5 + $0x510] sm:$0xff]
    %v298 = vld [vmem:[#allocation5 + $0x518] sm:$0xff]
    %v299 = vld [vmem:[#allocation5 + $0x520] sm:$0xff]
    %v300 = vld [vmem:[#allocation5 + $0x528] sm:$0xff]
    %v301 = vld [vmem:[#allocation5 + $0x530] sm:$0xff]
    %v302 = vld [vmem:[#allocation5 + $0x538] sm:$0xff]
    %v303 = vld [vmem:[#allocation5 + $0x540] sm:$0xff]
    %v304 = vld [vmem:[#allocation5 + $0x548] sm:$0xff]
    %v305 = vld [vmem:[#allocation5 + $0x550] sm:$0xff]
    %v306 = vld [vmem:[#allocation5 + $0x558] sm:$0xff]
    %v307 = vld [vmem:[#allocation5 + $0x560] sm:$0xff]
    %v308 = vld [vmem:[#allocation5 + $0x568] sm:$0xff]
    %v309 = vld [vmem:[#allocation5 + $0x570] sm:$0xff]
    %v310 = vld [vmem:[#allocation5 + $0x578] sm:$0xff]
    %v311 = vld [vmem:[#allocation5 + $0x580] sm:$0xff]
    %v312 = vld [vmem:[#allocation5 + $0x588] sm:$0xff]
    %v313 = vld [vmem:[#allocation5 + $0x590] sm:$0xff]
    %v314 = vld [vmem:[#allocation5 + $0x598] sm:$0xff]
    %v315 = vld [vmem:[#allocation5 + $0x5a0] sm:$0xff]
    %v316 = vld [vmem:[#allocation5 + $0x5a8] sm:$0xff]
    %v317 = vld [vmem:[#allocation5 + $0x5b0] sm:$0xff]
    %v318 = vld [vmem:[#allocation5 + $0x5b8] sm:$0xff]
    %v319 = vld [vmem:[#allocation5 + $0x5c0] sm:$0xff]
    %v320 = vld [vmem:[#allocation5 + $0x5c8] sm:$0xff]
    %v321 = vld [vmem:[#allocation5 + $0x5d0] sm:$0xff]
    %v322 = vld [vmem:[#allocation5 + $0x5d8] sm:$0xff]
    %v323 = vld [vmem:[#allocation5 + $0x5e0] sm:$0xff]
    %v324 = vld [vmem:[#allocation5 + $0x5e8] sm:$0xff]
    %v325 = vld [vmem:[#allocation5 + $0x5f0] sm:$0xff]
    %v326 = vld [vmem:[#allocation5 + $0x5f8] sm:$0xff]
    %v327 = vld [vmem:[#allocation5 + $0x600] sm:$0xff]
    %v328 = vld [vmem:[#allocation5 + $0x608] sm:$0xff]
    %v329 = vld [vmem:[#allocation5 + $0x610] sm:$0xff]
    %v330 = vld [vmem:[#allocation5 + $0x618] sm:$0xff]
    %v331 = vld [vmem:[#allocation5 + $0x620] sm:$0xff]
    %v332 = vld [vmem:[#allocation5 + $0x628] sm:$0xff]
    %v333 = vld [vmem:[#allocation5 + $0x630] sm:$0xff]
    %v334 = vld [vmem:[#allocation5 + $0x638] sm:$0xff]
    %v335 = vld [vmem:[#allocation5 + $0x640] sm:$0xff]
    %v336 = vld [vmem:[#allocation5 + $0x648] sm:$0xff]
    %v337 = vld [vmem:[#allocation5 + $0x650] sm:$0xff]
    %v338 = vld [vmem:[#allocation5 + $0x658] sm:$0xff]
    %v339 = vld [vmem:[#allocation5 + $0x660] sm:$0xff]
    %v340 = vld [vmem:[#allocation5 + $0x668] sm:$0xff]
    %v341 = vld [vmem:[#allocation5 + $0x670] sm:$0xff]
    %v342 = vld [vmem:[#allocation5 + $0x678] sm:$0xff]
    %v343 = vld [vmem:[#allocation5 + $0x680] sm:$0xff]
    %v344 = vld [vmem:[#allocation5 + $0x688] sm:$0xff]
    %v345 = vld [vmem:[#allocation5 + $0x690] sm:$0xff]
    %v346 = vld [vmem:[#allocation5 + $0x698] sm:$0xff]
    %v347 = vld [vmem:[#allocation5 + $0x6a0] sm:$0xff]
    %v348 = vld [vmem:[#allocation5 + $0x6a8] sm:$0xff]
    %v349 = vld [vmem:[#allocation5 + $0x6b0] sm:$0xff]
    %v350 = vld [vmem:[#allocation5 + $0x6b8] sm:$0xff]
    %v351 = vld [vmem:[#allocation5 + $0x6c0] sm:$0xff]
    %v352 = vld [vmem:[#allocation5 + $0x6c8] sm:$0xff]
    %v353 = vld [vmem:[#allocation5 + $0x6d0] sm:$0xff]
    %v354 = vld [vmem:[#allocation5 + $0x6d8] sm:$0xff]
    %v355 = vld [vmem:[#allocation5 + $0x6e0] sm:$0xff]
    %v356 = vld [vmem:[#allocation5 + $0x6e8] sm:$0xff]
    %v357 = vld [vmem:[#allocation5 + $0x6f0] sm:$0xff]
    %v358 = vld [vmem:[#allocation5 + $0x6f8] sm:$0xff]
    %v359 = vld [vmem:[#allocation5 + $0x700] sm:$0xff]
    %v360 = vld [vmem:[#allocation5 + $0x708] sm:$0xff]
    %v361 = vld [vmem:[#allocation5 + $0x710] sm:$0xff]
    %v362 = vld [vmem:[#allocation5 + $0x718] sm:$0xff]
    %v363 = vld [vmem:[#allocation5 + $0x720] sm:$0xff]
    %v364 = vld [vmem:[#allocation5 + $0x728] sm:$0xff]
    %v365 = vld [vmem:[#allocation5 + $0x730] sm:$0xff]
    %v366 = vld [vmem:[#allocation5 + $0x738] sm:$0xff]
    %v367 = vld [vmem:[#allocation5 + $0x740] sm:$0xff]
    %v368 = vld [vmem:[#allocation5 + $0x748] sm:$0xff]
    %v369 = vld [vmem:[#allocation5 + $0x750] sm:$0xff]
    %v370 = vld [vmem:[#allocation5 + $0x758] sm:$0xff]
    %v371 = vld [vmem:[#allocation5 + $0x760] sm:$0xff]
    %v372 = vld [vmem:[#allocation5 + $0x768] sm:$0xff]
    %v373 = vld [vmem:[#allocation5 + $0x770] sm:$0xff]
    %v374 = vld [vmem:[#allocation5 + $0x778] sm:$0xff]
    %v375 = vld [vmem:[#allocation5 + $0x780] sm:$0xff]
    %v376 = vld [vmem:[#allocation5 + $0x788] sm:$0xff]
    %v377 = vld [vmem:[#allocation5 + $0x790] sm:$0xff]
    %v378 = vld [vmem:[#allocation5 + $0x798] sm:$0xff]
    %v379 = vld [vmem:[#allocation5 + $0x7a0] sm:$0xff]
    %v380 = vld [vmem:[#allocation5 + $0x7a8] sm:$0xff]
    %v381 = vld [vmem:[#allocation5 + $0x7b0] sm:$0xff]
    %v382 = vld [vmem:[#allocation5 + $0x7b8] sm:$0xff]
    %v383 = vld [vmem:[#allocation5 + $0x7c0] sm:$0xff]
    %v384 = vld [vmem:[#allocation5 + $0x7c8] sm:$0xff]
    %v385 = vld [vmem:[#allocation5 + $0x7d0] sm:$0xff]
    %v386 = vld [vmem:[#allocation5 + $0x7d8] sm:$0xff]
    %v387 = vld [vmem:[#allocation5 + $0x7e0] sm:$0xff]
    %v388 = vld [vmem:[#allocation5 + $0x7e8] sm:$0xff]
    %v389 = vld [vmem:[#allocation5 + $0x7f0] sm:$0xff]
    %v390 = vld [vmem:[#allocation5 + $0x7f8] sm:$0xff]
    %v391 = vld [vmem:[%s2] sm:$0xf]
    %v393 = vlaneseq
    %v394 = vshrl.u32 %v393, 7
    %v395 = vsub.s32 0, %v394
    %v396 = vrot.slane %v391, %v395
    %v397 = vlaneseq
    %v398 = vshrl.u32 %v397, 7
    %v399 = vsub.s32 1, %v398
    %v400 = vrot.slane %v391, %v399
    %v401 = vlaneseq
    %v402 = vshrl.u32 %v401, 7
    %v403 = vsub.s32 2, %v402
    %v404 = vrot.slane %v391, %v403
    %v405 = vlaneseq
    %v406 = vshrl.u32 %v405, 7
    %v407 = vsub.s32 3, %v406
    %v408 = vrot.slane %v391, %v407
    %v669 = vunpack.c.l.b16 %v135
    %v670 = vunpack.c.h.b16 %v135
    %v671 = vunpack.c.l.b16 %v136
    %v672 = vunpack.c.h.b16 %v136
    %v673 = vunpack.c.l.b16 %v137
    %v674 = vunpack.c.h.b16 %v137
    %v675 = vunpack.c.l.b16 %v138
    %v676 = vunpack.c.h.b16 %v138
    %v677 = vunpack.c.l.b16 %v139
    %v678 = vunpack.c.h.b16 %v139
    %v679 = vunpack.c.l.b16 %v140
    %v680 = vunpack.c.h.b16 %v140
    %v681 = vunpack.c.l.b16 %v141
    %v682 = vunpack.c.h.b16 %v141
    %v683 = vunpack.c.l.b16 %v142
    %v684 = vunpack.c.h.b16 %v142
    %v685 = vunpack.c.l.b16 %v143
    %v686 = vunpack.c.h.b16 %v143
    %v687 = vunpack.c.l.b16 %v144
    %v688 = vunpack.c.h.b16 %v144
    %v689 = vunpack.c.l.b16 %v145
    %v690 = vunpack.c.h.b16 %v145
    %v691 = vunpack.c.l.b16 %v146
    %v692 = vunpack.c.h.b16 %v146
    %v693 = vunpack.c.l.b16 %v147
    %v694 = vunpack.c.h.b16 %v147
    %v695 = vunpack.c.l.b16 %v148
    %v696 = vunpack.c.h.b16 %v148
    %v697 = vunpack.c.l.b16 %v149
    %v698 = vunpack.c.h.b16 %v149
    %v699 = vunpack.c.l.b16 %v150
    %v700 = vunpack.c.h.b16 %v150
    %v701 = vunpack.c.l.b16 %v151
    %v702 = vunpack.c.h.b16 %v151
    %v703 = vunpack.c.l.b16 %v152
    %v704 = vunpack.c.h.b16 %v152
    %v705 = vunpack.c.l.b16 %v153
    %v706 = vunpack.c.h.b16 %v153
    %v707 = vunpack.c.l.b16 %v154
    %v708 = vunpack.c.h.b16 %v154
    %v709 = vunpack.c.l.b16 %v155
    %v710 = vunpack.c.h.b16 %v155
    %v711 = vunpack.c.l.b16 %v156
    %v712 = vunpack.c.h.b16 %v156
    %v713 = vunpack.c.l.b16 %v157
    %v714 = vunpack.c.h.b16 %v157
    %v715 = vunpack.c.l.b16 %v158
    %v716 = vunpack.c.h.b16 %v158
    %v717 = vunpack.c.l.b16 %v159
    %v718 = vunpack.c.h.b16 %v159
    %v719 = vunpack.c.l.b16 %v160
    %v720 = vunpack.c.h.b16 %v160
    %v721 = vunpack.c.l.b16 %v161
    %v722 = vunpack.c.h.b16 %v161
    %v723 = vunpack.c.l.b16 %v162
    %v724 = vunpack.c.h.b16 %v162
    %v725 = vunpack.c.l.b16 %v163
    %v726 = vunpack.c.h.b16 %v163
    %v727 = vunpack.c.l.b16 %v164
    %v728 = vunpack.c.h.b16 %v164
    %v729 = vunpack.c.l.b16 %v165
    %v730 = vunpack.c.h.b16 %v165
    %v731 = vunpack.c.l.b16 %v166
    %v732 = vunpack.c.h.b16 %v166
    %v733 = vunpack.c.l.b16 %v167
    %v734 = vunpack.c.h.b16 %v167
    %v735 = vunpack.c.l.b16 %v168
    %v736 = vunpack.c.h.b16 %v168
    %v737 = vunpack.c.l.b16 %v169
    %v738 = vunpack.c.h.b16 %v169
    %v739 = vunpack.c.l.b16 %v170
    %v740 = vunpack.c.h.b16 %v170
    %v741 = vunpack.c.l.b16 %v171
    %v742 = vunpack.c.h.b16 %v171
    %v743 = vunpack.c.l.b16 %v172
    %v744 = vunpack.c.h.b16 %v172
    %v745 = vunpack.c.l.b16 %v173
    %v746 = vunpack.c.h.b16 %v173
    %v747 = vunpack.c.l.b16 %v174
    %v748 = vunpack.c.h.b16 %v174
    %v749 = vunpack.c.l.b16 %v175
    %v750 = vunpack.c.h.b16 %v175
    %v751 = vunpack.c.l.b16 %v176
    %v752 = vunpack.c.h.b16 %v176
    %v753 = vunpack.c.l.b16 %v177
    %v754 = vunpack.c.h.b16 %v177
    %v755 = vunpack.c.l.b16 %v178
    %v756 = vunpack.c.h.b16 %v178
    %v757 = vunpack.c.l.b16 %v179
    %v758 = vunpack.c.h.b16 %v179
    %v759 = vunpack.c.l.b16 %v180
    %v760 = vunpack.c.h.b16 %v180
    %v761 = vunpack.c.l.b16 %v181
    %v762 = vunpack.c.h.b16 %v181
    %v763 = vunpack.c.l.b16 %v182
    %v764 = vunpack.c.h.b16 %v182
    %v765 = vunpack.c.l.b16 %v183
    %v766 = vunpack.c.h.b16 %v183
    %v767 = vunpack.c.l.b16 %v184
    %v768 = vunpack.c.h.b16 %v184
    %v769 = vunpack.c.l.b16 %v185
    %v770 = vunpack.c.h.b16 %v185
    %v771 = vunpack.c.l.b16 %v186
    %v772 = vunpack.c.h.b16 %v186
    %v773 = vunpack.c.l.b16 %v187
    %v774 = vunpack.c.h.b16 %v187
    %v775 = vunpack.c.l.b16 %v188
    %v776 = vunpack.c.h.b16 %v188
    %v777 = vunpack.c.l.b16 %v189
    %v778 = vunpack.c.h.b16 %v189
    %v779 = vunpack.c.l.b16 %v190
    %v780 = vunpack.c.h.b16 %v190
    %v781 = vunpack.c.l.b16 %v191
    %v782 = vunpack.c.h.b16 %v191
    %v783 = vunpack.c.l.b16 %v192
    %v784 = vunpack.c.h.b16 %v192
    %v785 = vunpack.c.l.b16 %v193
    %v786 = vunpack.c.h.b16 %v193
    %v787 = vunpack.c.l.b16 %v194
    %v788 = vunpack.c.h.b16 %v194
    %v789 = vunpack.c.l.b16 %v195
    %v790 = vunpack.c.h.b16 %v195
    %v791 = vunpack.c.l.b16 %v196
    %v792 = vunpack.c.h.b16 %v196
    %v793 = vunpack.c.l.b16 %v197
    %v794 = vunpack.c.h.b16 %v197
    %v795 = vunpack.c.l.b16 %v198
    %v796 = vunpack.c.h.b16 %v198
    %v797 = vunpack.c.l.b16 %v199
    %v798 = vunpack.c.h.b16 %v199
    %v799 = vunpack.c.l.b16 %v200
    %v800 = vunpack.c.h.b16 %v200
    %v801 = vunpack.c.l.b16 %v201
    %v802 = vunpack.c.h.b16 %v201
    %v803 = vunpack.c.l.b16 %v202
    %v804 = vunpack.c.h.b16 %v202
    %v805 = vunpack.c.l.b16 %v203
    %v806 = vunpack.c.h.b16 %v203
    %v807 = vunpack.c.l.b16 %v204
    %v808 = vunpack.c.h.b16 %v204
    %v809 = vunpack.c.l.b16 %v205
    %v810 = vunpack.c.h.b16 %v205
    %v811 = vunpack.c.l.b16 %v206
    %v812 = vunpack.c.h.b16 %v206
    %v813 = vunpack.c.l.b16 %v207
    %v814 = vunpack.c.h.b16 %v207
    %v815 = vunpack.c.l.b16 %v208
    %v816 = vunpack.c.h.b16 %v208
    %v817 = vunpack.c.l.b16 %v209
    %v818 = vunpack.c.h.b16 %v209
    %v819 = vunpack.c.l.b16 %v210
    %v820 = vunpack.c.h.b16 %v210
    %v821 = vunpack.c.l.b16 %v211
    %v822 = vunpack.c.h.b16 %v211
    %v823 = vunpack.c.l.b16 %v212
    %v824 = vunpack.c.h.b16 %v212
    %v825 = vunpack.c.l.b16 %v213
    %v826 = vunpack.c.h.b16 %v213
    %v827 = vunpack.c.l.b16 %v214
    %v828 = vunpack.c.h.b16 %v214
    %v829 = vunpack.c.l.b16 %v215
    %v830 = vunpack.c.h.b16 %v215
    %v831 = vunpack.c.l.b16 %v216
    %v832 = vunpack.c.h.b16 %v216
    %v833 = vunpack.c.l.b16 %v217
    %v834 = vunpack.c.h.b16 %v217
    %v835 = vunpack.c.l.b16 %v218
    %v836 = vunpack.c.h.b16 %v218
    %v837 = vunpack.c.l.b16 %v219
    %v838 = vunpack.c.h.b16 %v219
    %v839 = vunpack.c.l.b16 %v220
    %v840 = vunpack.c.h.b16 %v220
    %v841 = vunpack.c.l.b16 %v221
    %v842 = vunpack.c.h.b16 %v221
    %v843 = vunpack.c.l.b16 %v222
    %v844 = vunpack.c.h.b16 %v222
    %v845 = vunpack.c.l.b16 %v223
    %v846 = vunpack.c.h.b16 %v223
    %v847 = vunpack.c.l.b16 %v224
    %v848 = vunpack.c.h.b16 %v224
    %v849 = vunpack.c.l.b16 %v225
    %v850 = vunpack.c.h.b16 %v225
    %v851 = vunpack.c.l.b16 %v226
    %v852 = vunpack.c.h.b16 %v226
    %v853 = vunpack.c.l.b16 %v227
    %v854 = vunpack.c.h.b16 %v227
    %v855 = vunpack.c.l.b16 %v228
    %v856 = vunpack.c.h.b16 %v228
    %v857 = vunpack.c.l.b16 %v229
    %v858 = vunpack.c.h.b16 %v229
    %v859 = vunpack.c.l.b16 %v230
    %v860 = vunpack.c.h.b16 %v230
    %v861 = vunpack.c.l.b16 %v231
    %v862 = vunpack.c.h.b16 %v231
    %v863 = vunpack.c.l.b16 %v232
    %v864 = vunpack.c.h.b16 %v232
    %v865 = vunpack.c.l.b16 %v233
    %v866 = vunpack.c.h.b16 %v233
    %v867 = vunpack.c.l.b16 %v234
    %v868 = vunpack.c.h.b16 %v234
    %v869 = vunpack.c.l.b16 %v235
    %v870 = vunpack.c.h.b16 %v235
    %v871 = vunpack.c.l.b16 %v236
    %v872 = vunpack.c.h.b16 %v236
    %v873 = vunpack.c.l.b16 %v237
    %v874 = vunpack.c.h.b16 %v237
    %v875 = vunpack.c.l.b16 %v238
    %v876 = vunpack.c.h.b16 %v238
    %v877 = vunpack.c.l.b16 %v239
    %v878 = vunpack.c.h.b16 %v239
    %v879 = vunpack.c.l.b16 %v240
    %v880 = vunpack.c.h.b16 %v240
    %v881 = vunpack.c.l.b16 %v241
    %v882 = vunpack.c.h.b16 %v241
    %v883 = vunpack.c.l.b16 %v242
    %v884 = vunpack.c.h.b16 %v242
    %v885 = vunpack.c.l.b16 %v243
    %v886 = vunpack.c.h.b16 %v243
    %v887 = vunpack.c.l.b16 %v244
    %v888 = vunpack.c.h.b16 %v244
    %v889 = vunpack.c.l.b16 %v245
    %v890 = vunpack.c.h.b16 %v245
    %v891 = vunpack.c.l.b16 %v246
    %v892 = vunpack.c.h.b16 %v246
    %v893 = vunpack.c.l.b16 %v247
    %v894 = vunpack.c.h.b16 %v247
    %v895 = vunpack.c.l.b16 %v248
    %v896 = vunpack.c.h.b16 %v248
    %v897 = vunpack.c.l.b16 %v249
    %v898 = vunpack.c.h.b16 %v249
    %v899 = vunpack.c.l.b16 %v250
    %v900 = vunpack.c.h.b16 %v250
    %v901 = vunpack.c.l.b16 %v251
    %v902 = vunpack.c.h.b16 %v251
    %v903 = vunpack.c.l.b16 %v252
    %v904 = vunpack.c.h.b16 %v252
    %v905 = vunpack.c.l.b16 %v253
    %v906 = vunpack.c.h.b16 %v253
    %v907 = vunpack.c.l.b16 %v254
    %v908 = vunpack.c.h.b16 %v254
    %v909 = vunpack.c.l.b16 %v255
    %v910 = vunpack.c.h.b16 %v255
    %v911 = vunpack.c.l.b16 %v256
    %v912 = vunpack.c.h.b16 %v256
    %v913 = vunpack.c.l.b16 %v257
    %v914 = vunpack.c.h.b16 %v257
    %v915 = vunpack.c.l.b16 %v258
    %v916 = vunpack.c.h.b16 %v258
    %v917 = vunpack.c.l.b16 %v259
    %v918 = vunpack.c.h.b16 %v259
    %v919 = vunpack.c.l.b16 %v260
    %v920 = vunpack.c.h.b16 %v260
    %v921 = vunpack.c.l.b16 %v261
    %v922 = vunpack.c.h.b16 %v261
    %v923 = vunpack.c.l.b16 %v262
    %v924 = vunpack.c.h.b16 %v262
    %v925 = vunpack.c.l.b16 %v263
    %v926 = vunpack.c.h.b16 %v263
    %v927 = vunpack.c.l.b16 %v264
    %v928 = vunpack.c.h.b16 %v264
    %v929 = vunpack.c.l.b16 %v265
    %v930 = vunpack.c.h.b16 %v265
    %v931 = vunpack.c.l.b16 %v266
    %v932 = vunpack.c.h.b16 %v266
    %v933 = vunpack.c.l.b16 %v267
    %v934 = vunpack.c.h.b16 %v267
    %v935 = vunpack.c.l.b16 %v268
    %v936 = vunpack.c.h.b16 %v268
    %v937 = vunpack.c.l.b16 %v269
    %v938 = vunpack.c.h.b16 %v269
    %v939 = vunpack.c.l.b16 %v270
    %v940 = vunpack.c.h.b16 %v270
    %v941 = vunpack.c.l.b16 %v271
    %v942 = vunpack.c.h.b16 %v271
    %v943 = vunpack.c.l.b16 %v272
    %v944 = vunpack.c.h.b16 %v272
    %v945 = vunpack.c.l.b16 %v273
    %v946 = vunpack.c.h.b16 %v273
    %v947 = vunpack.c.l.b16 %v274
    %v948 = vunpack.c.h.b16 %v274
    %v949 = vunpack.c.l.b16 %v275
    %v950 = vunpack.c.h.b16 %v275
    %v951 = vunpack.c.l.b16 %v276
    %v952 = vunpack.c.h.b16 %v276
    %v953 = vunpack.c.l.b16 %v277
    %v954 = vunpack.c.h.b16 %v277
    %v955 = vunpack.c.l.b16 %v278
    %v956 = vunpack.c.h.b16 %v278
    %v957 = vunpack.c.l.b16 %v279
    %v958 = vunpack.c.h.b16 %v279
    %v959 = vunpack.c.l.b16 %v280
    %v960 = vunpack.c.h.b16 %v280
    %v961 = vunpack.c.l.b16 %v281
    %v962 = vunpack.c.h.b16 %v281
    %v963 = vunpack.c.l.b16 %v282
    %v964 = vunpack.c.h.b16 %v282
    %v965 = vunpack.c.l.b16 %v283
    %v966 = vunpack.c.h.b16 %v283
    %v967 = vunpack.c.l.b16 %v284
    %v968 = vunpack.c.h.b16 %v284
    %v969 = vunpack.c.l.b16 %v285
    %v970 = vunpack.c.h.b16 %v285
    %v971 = vunpack.c.l.b16 %v286
    %v972 = vunpack.c.h.b16 %v286
    %v973 = vunpack.c.l.b16 %v287
    %v974 = vunpack.c.h.b16 %v287
    %v975 = vunpack.c.l.b16 %v288
    %v976 = vunpack.c.h.b16 %v288
    %v977 = vunpack.c.l.b16 %v289
    %v978 = vunpack.c.h.b16 %v289
    %v979 = vunpack.c.l.b16 %v290
    %v980 = vunpack.c.h.b16 %v290
    %v981 = vunpack.c.l.b16 %v291
    %v982 = vunpack.c.h.b16 %v291
    %v983 = vunpack.c.l.b16 %v292
    %v984 = vunpack.c.h.b16 %v292
    %v985 = vunpack.c.l.b16 %v293
    %v986 = vunpack.c.h.b16 %v293
    %v987 = vunpack.c.l.b16 %v294
    %v988 = vunpack.c.h.b16 %v294
    %v989 = vunpack.c.l.b16 %v295
    %v990 = vunpack.c.h.b16 %v295
    %v991 = vunpack.c.l.b16 %v296
    %v992 = vunpack.c.h.b16 %v296
    %v993 = vunpack.c.l.b16 %v297
    %v994 = vunpack.c.h.b16 %v297
    %v995 = vunpack.c.l.b16 %v298
    %v996 = vunpack.c.h.b16 %v298
    %v997 = vunpack.c.l.b16 %v299
    %v998 = vunpack.c.h.b16 %v299
    %v999 = vunpack.c.l.b16 %v300
    %v1000 = vunpack.c.h.b16 %v300
    %v1001 = vunpack.c.l.b16 %v301
    %v1002 = vunpack.c.h.b16 %v301
    %v1003 = vunpack.c.l.b16 %v302
    %v1004 = vunpack.c.h.b16 %v302
    %v1005 = vunpack.c.l.b16 %v303
    %v1006 = vunpack.c.h.b16 %v303
    %v1007 = vunpack.c.l.b16 %v304
    %v1008 = vunpack.c.h.b16 %v304
    %v1009 = vunpack.c.l.b16 %v305
    %v1010 = vunpack.c.h.b16 %v305
    %v1011 = vunpack.c.l.b16 %v306
    %v1012 = vunpack.c.h.b16 %v306
    %v1013 = vunpack.c.l.b16 %v307
    %v1014 = vunpack.c.h.b16 %v307
    %v1015 = vunpack.c.l.b16 %v308
    %v1016 = vunpack.c.h.b16 %v308
    %v1017 = vunpack.c.l.b16 %v309
    %v1018 = vunpack.c.h.b16 %v309
    %v1019 = vunpack.c.l.b16 %v310
    %v1020 = vunpack.c.h.b16 %v310
    %v1021 = vunpack.c.l.b16 %v311
    %v1022 = vunpack.c.h.b16 %v311
    %v1023 = vunpack.c.l.b16 %v312
    %v1024 = vunpack.c.h.b16 %v312
    %v1025 = vunpack.c.l.b16 %v313
    %v1026 = vunpack.c.h.b16 %v313
    %v1027 = vunpack.c.l.b16 %v314
    %v1028 = vunpack.c.h.b16 %v314
    %v1029 = vunpack.c.l.b16 %v315
    %v1030 = vunpack.c.h.b16 %v315
    %v1031 = vunpack.c.l.b16 %v316
    %v1032 = vunpack.c.h.b16 %v316
    %v1033 = vunpack.c.l.b16 %v317
    %v1034 = vunpack.c.h.b16 %v317
    %v1035 = vunpack.c.l.b16 %v318
    %v1036 = vunpack.c.h.b16 %v318
    %v1037 = vunpack.c.l.b16 %v319
    %v1038 = vunpack.c.h.b16 %v319
    %v1039 = vunpack.c.l.b16 %v320
    %v1040 = vunpack.c.h.b16 %v320
    %v1041 = vunpack.c.l.b16 %v321
    %v1042 = vunpack.c.h.b16 %v321
    %v1043 = vunpack.c.l.b16 %v322
    %v1044 = vunpack.c.h.b16 %v322
    %v1045 = vunpack.c.l.b16 %v323
    %v1046 = vunpack.c.h.b16 %v323
    %v1047 = vunpack.c.l.b16 %v324
    %v1048 = vunpack.c.h.b16 %v324
    %v1049 = vunpack.c.l.b16 %v325
    %v1050 = vunpack.c.h.b16 %v325
    %v1051 = vunpack.c.l.b16 %v326
    %v1052 = vunpack.c.h.b16 %v326
    %v1053 = vunpack.c.l.b16 %v327
    %v1054 = vunpack.c.h.b16 %v327
    %v1055 = vunpack.c.l.b16 %v328
    %v1056 = vunpack.c.h.b16 %v328
    %v1057 = vunpack.c.l.b16 %v329
    %v1058 = vunpack.c.h.b16 %v329
    %v1059 = vunpack.c.l.b16 %v330
    %v1060 = vunpack.c.h.b16 %v330
    %v1061 = vunpack.c.l.b16 %v331
    %v1062 = vunpack.c.h.b16 %v331
    %v1063 = vunpack.c.l.b16 %v332
    %v1064 = vunpack.c.h.b16 %v332
    %v1065 = vunpack.c.l.b16 %v333
    %v1066 = vunpack.c.h.b16 %v333
    %v1067 = vunpack.c.l.b16 %v334
    %v1068 = vunpack.c.h.b16 %v334
    %v1069 = vunpack.c.l.b16 %v335
    %v1070 = vunpack.c.h.b16 %v335
    %v1071 = vunpack.c.l.b16 %v336
    %v1072 = vunpack.c.h.b16 %v336
    %v1073 = vunpack.c.l.b16 %v337
    %v1074 = vunpack.c.h.b16 %v337
    %v1075 = vunpack.c.l.b16 %v338
    %v1076 = vunpack.c.h.b16 %v338
    %v1077 = vunpack.c.l.b16 %v339
    %v1078 = vunpack.c.h.b16 %v339
    %v1079 = vunpack.c.l.b16 %v340
    %v1080 = vunpack.c.h.b16 %v340
    %v1081 = vunpack.c.l.b16 %v341
    %v1082 = vunpack.c.h.b16 %v341
    %v1083 = vunpack.c.l.b16 %v342
    %v1084 = vunpack.c.h.b16 %v342
    %v1085 = vunpack.c.l.b16 %v343
    %v1086 = vunpack.c.h.b16 %v343
    %v1087 = vunpack.c.l.b16 %v344
    %v1088 = vunpack.c.h.b16 %v344
    %v1089 = vunpack.c.l.b16 %v345
    %v1090 = vunpack.c.h.b16 %v345
    %v1091 = vunpack.c.l.b16 %v346
    %v1092 = vunpack.c.h.b16 %v346
    %v1093 = vunpack.c.l.b16 %v347
    %v1094 = vunpack.c.h.b16 %v347
    %v1095 = vunpack.c.l.b16 %v348
    %v1096 = vunpack.c.h.b16 %v348
    %v1097 = vunpack.c.l.b16 %v349
    %v1098 = vunpack.c.h.b16 %v349
    %v1099 = vunpack.c.l.b16 %v350
    %v1100 = vunpack.c.h.b16 %v350
    %v1101 = vunpack.c.l.b16 %v351
    %v1102 = vunpack.c.h.b16 %v351
    %v1103 = vunpack.c.l.b16 %v352
    %v1104 = vunpack.c.h.b16 %v352
    %v1105 = vunpack.c.l.b16 %v353
    %v1106 = vunpack.c.h.b16 %v353
    %v1107 = vunpack.c.l.b16 %v354
    %v1108 = vunpack.c.h.b16 %v354
    %v1109 = vunpack.c.l.b16 %v355
    %v1110 = vunpack.c.h.b16 %v355
    %v1111 = vunpack.c.l.b16 %v356
    %v1112 = vunpack.c.h.b16 %v356
    %v1113 = vunpack.c.l.b16 %v357
    %v1114 = vunpack.c.h.b16 %v357
    %v1115 = vunpack.c.l.b16 %v358
    %v1116 = vunpack.c.h.b16 %v358
    %v1117 = vunpack.c.l.b16 %v359
    %v1118 = vunpack.c.h.b16 %v359
    %v1119 = vunpack.c.l.b16 %v360
    %v1120 = vunpack.c.h.b16 %v360
    %v1121 = vunpack.c.l.b16 %v361
    %v1122 = vunpack.c.h.b16 %v361
    %v1123 = vunpack.c.l.b16 %v362
    %v1124 = vunpack.c.h.b16 %v362
    %v1125 = vunpack.c.l.b16 %v363
    %v1126 = vunpack.c.h.b16 %v363
    %v1127 = vunpack.c.l.b16 %v364
    %v1128 = vunpack.c.h.b16 %v364
    %v1129 = vunpack.c.l.b16 %v365
    %v1130 = vunpack.c.h.b16 %v365
    %v1131 = vunpack.c.l.b16 %v366
    %v1132 = vunpack.c.h.b16 %v366
    %v1133 = vunpack.c.l.b16 %v367
    %v1134 = vunpack.c.h.b16 %v367
    %v1135 = vunpack.c.l.b16 %v368
    %v1136 = vunpack.c.h.b16 %v368
    %v1137 = vunpack.c.l.b16 %v369
    %v1138 = vunpack.c.h.b16 %v369
    %v1139 = vunpack.c.l.b16 %v370
    %v1140 = vunpack.c.h.b16 %v370
    %v1141 = vunpack.c.l.b16 %v371
    %v1142 = vunpack.c.h.b16 %v371
    %v1143 = vunpack.c.l.b16 %v372
    %v1144 = vunpack.c.h.b16 %v372
    %v1145 = vunpack.c.l.b16 %v373
    %v1146 = vunpack.c.h.b16 %v373
    %v1147 = vunpack.c.l.b16 %v374
    %v1148 = vunpack.c.h.b16 %v374
    %v1149 = vunpack.c.l.b16 %v375
    %v1150 = vunpack.c.h.b16 %v375
    %v1151 = vunpack.c.l.b16 %v376
    %v1152 = vunpack.c.h.b16 %v376
    %v1153 = vunpack.c.l.b16 %v377
    %v1154 = vunpack.c.h.b16 %v377
    %v1155 = vunpack.c.l.b16 %v378
    %v1156 = vunpack.c.h.b16 %v378
    %v1157 = vunpack.c.l.b16 %v379
    %v1158 = vunpack.c.h.b16 %v379
    %v1159 = vunpack.c.l.b16 %v380
    %v1160 = vunpack.c.h.b16 %v380
    %v1161 = vunpack.c.l.b16 %v381
    %v1162 = vunpack.c.h.b16 %v381
    %v1163 = vunpack.c.l.b16 %v382
    %v1164 = vunpack.c.h.b16 %v382
    %v1165 = vunpack.c.l.b16 %v383
    %v1166 = vunpack.c.h.b16 %v383
    %v1167 = vunpack.c.l.b16 %v384
    %v1168 = vunpack.c.h.b16 %v384
    %v1169 = vunpack.c.l.b16 %v385
    %v1170 = vunpack.c.h.b16 %v385
    %v1171 = vunpack.c.l.b16 %v386
    %v1172 = vunpack.c.h.b16 %v386
    %v1173 = vunpack.c.l.b16 %v387
    %v1174 = vunpack.c.h.b16 %v387
    %v1175 = vunpack.c.l.b16 %v388
    %v1176 = vunpack.c.h.b16 %v388
    %v1177 = vunpack.c.l.b16 %v389
    %v1178 = vunpack.c.h.b16 %v389
    %v1179 = vunpack.c.l.b16 %v390
    %v1180 = vunpack.c.h.b16 %v390
    %v1181 = vpack.c.b16 %v673, %v669
    %v1182 = vpack.c.b16 %v674, %v670
    %v1183 = vpack.c.b16 %v675, %v671
    %v1184 = vpack.c.b16 %v676, %v672
    %v1185 = vpack.c.b16 %v681, %v677
    %v1186 = vpack.c.b16 %v682, %v678
    %v1187 = vpack.c.b16 %v683, %v679
    %v1188 = vpack.c.b16 %v684, %v680
    %v1189 = vpack.c.b16 %v689, %v685
    %v1190 = vpack.c.b16 %v690, %v686
    %v1191 = vpack.c.b16 %v691, %v687
    %v1192 = vpack.c.b16 %v692, %v688
    %v1193 = vpack.c.b16 %v697, %v693
    %v1194 = vpack.c.b16 %v698, %v694
    %v1195 = vpack.c.b16 %v699, %v695
    %v1196 = vpack.c.b16 %v700, %v696
    %v1197 = vpack.c.b16 %v705, %v701
    %v1198 = vpack.c.b16 %v706, %v702
    %v1199 = vpack.c.b16 %v707, %v703
    %v1200 = vpack.c.b16 %v708, %v704
    %v1201 = vpack.c.b16 %v713, %v709
    %v1202 = vpack.c.b16 %v714, %v710
    %v1203 = vpack.c.b16 %v715, %v711
    %v1204 = vpack.c.b16 %v716, %v712
    %v1205 = vpack.c.b16 %v721, %v717
    %v1206 = vpack.c.b16 %v722, %v718
    %v1207 = vpack.c.b16 %v723, %v719
    %v1208 = vpack.c.b16 %v724, %v720
    %v1209 = vpack.c.b16 %v729, %v725
    %v1210 = vpack.c.b16 %v730, %v726
    %v1211 = vpack.c.b16 %v731, %v727
    %v1212 = vpack.c.b16 %v732, %v728
    %v1213 = vpack.c.b16 %v737, %v733
    %v1214 = vpack.c.b16 %v738, %v734
    %v1215 = vpack.c.b16 %v739, %v735
    %v1216 = vpack.c.b16 %v740, %v736
    %v1217 = vpack.c.b16 %v745, %v741
    %v1218 = vpack.c.b16 %v746, %v742
    %v1219 = vpack.c.b16 %v747, %v743
    %v1220 = vpack.c.b16 %v748, %v744
    %v1221 = vpack.c.b16 %v753, %v749
    %v1222 = vpack.c.b16 %v754, %v750
    %v1223 = vpack.c.b16 %v755, %v751
    %v1224 = vpack.c.b16 %v756, %v752
    %v1225 = vpack.c.b16 %v761, %v757
    %v1226 = vpack.c.b16 %v762, %v758
    %v1227 = vpack.c.b16 %v763, %v759
    %v1228 = vpack.c.b16 %v764, %v760
    %v1229 = vpack.c.b16 %v769, %v765
    %v1230 = vpack.c.b16 %v770, %v766
    %v1231 = vpack.c.b16 %v771, %v767
    %v1232 = vpack.c.b16 %v772, %v768
    %v1233 = vpack.c.b16 %v777, %v773
    %v1234 = vpack.c.b16 %v778, %v774
    %v1235 = vpack.c.b16 %v779, %v775
    %v1236 = vpack.c.b16 %v780, %v776
    %v1237 = vpack.c.b16 %v785, %v781
    %v1238 = vpack.c.b16 %v786, %v782
    %v1239 = vpack.c.b16 %v787, %v783
    %v1240 = vpack.c.b16 %v788, %v784
    %v1241 = vpack.c.b16 %v793, %v789
    %v1242 = vpack.c.b16 %v794, %v790
    %v1243 = vpack.c.b16 %v795, %v791
    %v1244 = vpack.c.b16 %v796, %v792
    %v1245 = vpack.c.b16 %v801, %v797
    %v1246 = vpack.c.b16 %v802, %v798
    %v1247 = vpack.c.b16 %v803, %v799
    %v1248 = vpack.c.b16 %v804, %v800
    %v1249 = vpack.c.b16 %v809, %v805
    %v1250 = vpack.c.b16 %v810, %v806
    %v1251 = vpack.c.b16 %v811, %v807
    %v1252 = vpack.c.b16 %v812, %v808
    %v1253 = vpack.c.b16 %v817, %v813
    %v1254 = vpack.c.b16 %v818, %v814
    %v1255 = vpack.c.b16 %v819, %v815
    %v1256 = vpack.c.b16 %v820, %v816
    %v1257 = vpack.c.b16 %v825, %v821
    %v1258 = vpack.c.b16 %v826, %v822
    %v1259 = vpack.c.b16 %v827, %v823
    %v1260 = vpack.c.b16 %v828, %v824
    %v1261 = vpack.c.b16 %v833, %v829
    %v1262 = vpack.c.b16 %v834, %v830
    %v1263 = vpack.c.b16 %v835, %v831
    %v1264 = vpack.c.b16 %v836, %v832
    %v1265 = vpack.c.b16 %v841, %v837
    %v1266 = vpack.c.b16 %v842, %v838
    %v1267 = vpack.c.b16 %v843, %v839
    %v1268 = vpack.c.b16 %v844, %v840
    %v1269 = vpack.c.b16 %v849, %v845
    %v1270 = vpack.c.b16 %v850, %v846
    %v1271 = vpack.c.b16 %v851, %v847
    %v1272 = vpack.c.b16 %v852, %v848
    %v1273 = vpack.c.b16 %v857, %v853
    %v1274 = vpack.c.b16 %v858, %v854
    %v1275 = vpack.c.b16 %v859, %v855
    %v1276 = vpack.c.b16 %v860, %v856
    %v1277 = vpack.c.b16 %v865, %v861
    %v1278 = vpack.c.b16 %v866, %v862
    %v1279 = vpack.c.b16 %v867, %v863
    %v1280 = vpack.c.b16 %v868, %v864
    %v1281 = vpack.c.b16 %v873, %v869
    %v1282 = vpack.c.b16 %v874, %v870
    %v1283 = vpack.c.b16 %v875, %v871
    %v1284 = vpack.c.b16 %v876, %v872
    %v1285 = vpack.c.b16 %v881, %v877
    %v1286 = vpack.c.b16 %v882, %v878
    %v1287 = vpack.c.b16 %v883, %v879
    %v1288 = vpack.c.b16 %v884, %v880
    %v1289 = vpack.c.b16 %v889, %v885
    %v1290 = vpack.c.b16 %v890, %v886
    %v1291 = vpack.c.b16 %v891, %v887
    %v1292 = vpack.c.b16 %v892, %v888
    %v1293 = vpack.c.b16 %v897, %v893
    %v1294 = vpack.c.b16 %v898, %v894
    %v1295 = vpack.c.b16 %v899, %v895
    %v1296 = vpack.c.b16 %v900, %v896
    %v1297 = vpack.c.b16 %v905, %v901
    %v1298 = vpack.c.b16 %v906, %v902
    %v1299 = vpack.c.b16 %v907, %v903
    %v1300 = vpack.c.b16 %v908, %v904
    %v1301 = vpack.c.b16 %v913, %v909
    %v1302 = vpack.c.b16 %v914, %v910
    %v1303 = vpack.c.b16 %v915, %v911
    %v1304 = vpack.c.b16 %v916, %v912
    %v1305 = vpack.c.b16 %v921, %v917
    %v1306 = vpack.c.b16 %v922, %v918
    %v1307 = vpack.c.b16 %v923, %v919
    %v1308 = vpack.c.b16 %v924, %v920
    %v1309 = vpack.c.b16 %v929, %v925
    %v1310 = vpack.c.b16 %v930, %v926
    %v1311 = vpack.c.b16 %v931, %v927
    %v1312 = vpack.c.b16 %v932, %v928
    %v1313 = vpack.c.b16 %v937, %v933
    %v1314 = vpack.c.b16 %v938, %v934
    %v1315 = vpack.c.b16 %v939, %v935
    %v1316 = vpack.c.b16 %v940, %v936
    %v1317 = vpack.c.b16 %v945, %v941
    %v1318 = vpack.c.b16 %v946, %v942
    %v1319 = vpack.c.b16 %v947, %v943
    %v1320 = vpack.c.b16 %v948, %v944
    %v1321 = vpack.c.b16 %v953, %v949
    %v1322 = vpack.c.b16 %v954, %v950
    %v1323 = vpack.c.b16 %v955, %v951
    %v1324 = vpack.c.b16 %v956, %v952
    %v1325 = vpack.c.b16 %v961, %v957
    %v1326 = vpack.c.b16 %v962, %v958
    %v1327 = vpack.c.b16 %v963, %v959
    %v1328 = vpack.c.b16 %v964, %v960
    %v1329 = vpack.c.b16 %v969, %v965
    %v1330 = vpack.c.b16 %v970, %v966
    %v1331 = vpack.c.b16 %v971, %v967
    %v1332 = vpack.c.b16 %v972, %v968
    %v1333 = vpack.c.b16 %v977, %v973
    %v1334 = vpack.c.b16 %v978, %v974
    %v1335 = vpack.c.b16 %v979, %v975
    %v1336 = vpack.c.b16 %v980, %v976
    %v1337 = vpack.c.b16 %v985, %v981
    %v1338 = vpack.c.b16 %v986, %v982
    %v1339 = vpack.c.b16 %v987, %v983
    %v1340 = vpack.c.b16 %v988, %v984
    %v1341 = vpack.c.b16 %v993, %v989
    %v1342 = vpack.c.b16 %v994, %v990
    %v1343 = vpack.c.b16 %v995, %v991
    %v1344 = vpack.c.b16 %v996, %v992
    %v1345 = vpack.c.b16 %v1001, %v997
    %v1346 = vpack.c.b16 %v1002, %v998
    %v1347 = vpack.c.b16 %v1003, %v999
    %v1348 = vpack.c.b16 %v1004, %v1000
    %v1349 = vpack.c.b16 %v1009, %v1005
    %v1350 = vpack.c.b16 %v1010, %v1006
    %v1351 = vpack.c.b16 %v1011, %v1007
    %v1352 = vpack.c.b16 %v1012, %v1008
    %v1353 = vpack.c.b16 %v1017, %v1013
    %v1354 = vpack.c.b16 %v1018, %v1014
    %v1355 = vpack.c.b16 %v1019, %v1015
    %v1356 = vpack.c.b16 %v1020, %v1016
    %v1357 = vpack.c.b16 %v1025, %v1021
    %v1358 = vpack.c.b16 %v1026, %v1022
    %v1359 = vpack.c.b16 %v1027, %v1023
    %v1360 = vpack.c.b16 %v1028, %v1024
    %v1361 = vpack.c.b16 %v1033, %v1029
    %v1362 = vpack.c.b16 %v1034, %v1030
    %v1363 = vpack.c.b16 %v1035, %v1031
    %v1364 = vpack.c.b16 %v1036, %v1032
    %v1365 = vpack.c.b16 %v1041, %v1037
    %v1366 = vpack.c.b16 %v1042, %v1038
    %v1367 = vpack.c.b16 %v1043, %v1039
    %v1368 = vpack.c.b16 %v1044, %v1040
    %v1369 = vpack.c.b16 %v1049, %v1045
    %v1370 = vpack.c.b16 %v1050, %v1046
    %v1371 = vpack.c.b16 %v1051, %v1047
    %v1372 = vpack.c.b16 %v1052, %v1048
    %v1373 = vpack.c.b16 %v1057, %v1053
    %v1374 = vpack.c.b16 %v1058, %v1054
    %v1375 = vpack.c.b16 %v1059, %v1055
    %v1376 = vpack.c.b16 %v1060, %v1056
    %v1377 = vpack.c.b16 %v1065, %v1061
    %v1378 = vpack.c.b16 %v1066, %v1062
    %v1379 = vpack.c.b16 %v1067, %v1063
    %v1380 = vpack.c.b16 %v1068, %v1064
    %v1381 = vpack.c.b16 %v1073, %v1069
    %v1382 = vpack.c.b16 %v1074, %v1070
    %v1383 = vpack.c.b16 %v1075, %v1071
    %v1384 = vpack.c.b16 %v1076, %v1072
    %v1385 = vpack.c.b16 %v1081, %v1077
    %v1386 = vpack.c.b16 %v1082, %v1078
    %v1387 = vpack.c.b16 %v1083, %v1079
    %v1388 = vpack.c.b16 %v1084, %v1080
    %v1389 = vpack.c.b16 %v1089, %v1085
    %v1390 = vpack.c.b16 %v1090, %v1086
    %v1391 = vpack.c.b16 %v1091, %v1087
    %v1392 = vpack.c.b16 %v1092, %v1088
    %v1393 = vpack.c.b16 %v1097, %v1093
    %v1394 = vpack.c.b16 %v1098, %v1094
    %v1395 = vpack.c.b16 %v1099, %v1095
    %v1396 = vpack.c.b16 %v1100, %v1096
    %v1397 = vpack.c.b16 %v1105, %v1101
    %v1398 = vpack.c.b16 %v1106, %v1102
    %v1399 = vpack.c.b16 %v1107, %v1103
    %v1400 = vpack.c.b16 %v1108, %v1104
    %v1401 = vpack.c.b16 %v1113, %v1109
    %v1402 = vpack.c.b16 %v1114, %v1110
    %v1403 = vpack.c.b16 %v1115, %v1111
    %v1404 = vpack.c.b16 %v1116, %v1112
    %v1405 = vpack.c.b16 %v1121, %v1117
    %v1406 = vpack.c.b16 %v1122, %v1118
    %v1407 = vpack.c.b16 %v1123, %v1119
    %v1408 = vpack.c.b16 %v1124, %v1120
    %v1409 = vpack.c.b16 %v1129, %v1125
    %v1410 = vpack.c.b16 %v1130, %v1126
    %v1411 = vpack.c.b16 %v1131, %v1127
    %v1412 = vpack.c.b16 %v1132, %v1128
    %v1413 = vpack.c.b16 %v1137, %v1133
    %v1414 = vpack.c.b16 %v1138, %v1134
    %v1415 = vpack.c.b16 %v1139, %v1135
    %v1416 = vpack.c.b16 %v1140, %v1136
    %v1417 = vpack.c.b16 %v1145, %v1141
    %v1418 = vpack.c.b16 %v1146, %v1142
    %v1419 = vpack.c.b16 %v1147, %v1143
    %v1420 = vpack.c.b16 %v1148, %v1144
    %v1421 = vpack.c.b16 %v1153, %v1149
    %v1422 = vpack.c.b16 %v1154, %v1150
    %v1423 = vpack.c.b16 %v1155, %v1151
    %v1424 = vpack.c.b16 %v1156, %v1152
    %v1425 = vpack.c.b16 %v1161, %v1157
    %v1426 = vpack.c.b16 %v1162, %v1158
    %v1427 = vpack.c.b16 %v1163, %v1159
    %v1428 = vpack.c.b16 %v1164, %v1160
    %v1429 = vpack.c.b16 %v1169, %v1165
    %v1430 = vpack.c.b16 %v1170, %v1166
    %v1431 = vpack.c.b16 %v1171, %v1167
    %v1432 = vpack.c.b16 %v1172, %v1168
    %v1433 = vpack.c.b16 %v1177, %v1173
    %v1434 = vpack.c.b16 %v1178, %v1174
    %v1435 = vpack.c.b16 %v1179, %v1175
    %v1436 = vpack.c.b16 %v1180, %v1176
    %1693 = vmatprep.subr.bf16.mxu0 %v1182
    %1694 = vmatpush1.bf16.msra.mxu0 %v1181
    %1695 = vmatprep.subr.bf16.mxu0 %v1186
    %1696 = vmatpush1.bf16.msra.mxu0 %v1185
    %1697 = vmatprep.subr.bf16.mxu0 %v1190
    %1698 = vmatpush1.bf16.msra.mxu0 %v1189
    %1699 = vmatprep.subr.bf16.mxu0 %v1194
    %1700 = vmatpush1.bf16.msra.mxu0 %v1193
    %1701 = vmatprep.subr.bf16.mxu0 %v1198
    %1702 = vmatpush1.bf16.msra.mxu0 %v1197
    %1703 = vmatprep.subr.bf16.mxu0 %v1202
    %1704 = vmatpush1.bf16.msra.mxu0 %v1201
    %1705 = vmatprep.subr.bf16.mxu0 %v1206
    %1706 = vmatpush1.bf16.msra.mxu0 %v1205
    %1707 = vmatprep.subr.bf16.mxu0 %v1210
    %1708 = vmatpush1.bf16.msra.mxu0 %v1209
    %1709 = vmatprep.subr.bf16.mxu0 %v1214
    %1710 = vmatpush1.bf16.msra.mxu0 %v1213
    %1711 = vmatprep.subr.bf16.mxu0 %v1218
    %1712 = vmatpush1.bf16.msra.mxu0 %v1217
    %1713 = vmatprep.subr.bf16.mxu0 %v1222
    %1714 = vmatpush1.bf16.msra.mxu0 %v1221
    %1715 = vmatprep.subr.bf16.mxu0 %v1226
    %1716 = vmatpush1.bf16.msra.mxu0 %v1225
    %1717 = vmatprep.subr.bf16.mxu0 %v1230
    %1718 = vmatpush1.bf16.msra.mxu0 %v1229
    %1719 = vmatprep.subr.bf16.mxu0 %v1234
    %1720 = vmatpush1.bf16.msra.mxu0 %v1233
    %1721 = vmatprep.subr.bf16.mxu0 %v1238
    %1722 = vmatpush1.bf16.msra.mxu0 %v1237
    %1723 = vmatprep.subr.bf16.mxu0 %v1242
    %1724 = vmatpush1.bf16.msra.mxu0 %v1241
    %1725 = vmatprep.mubr.bf16.mxu0 %v128
    %1726 = vmatmul.mubr.bf16.gmra.mrb[0].mxu0 %v127
    %v1727 = vpop.f32.mrb[0].mxu0
    %v1728 = vadd.f32 %v396, %v1727
    %v1729 = vpop.f32.mrb[0].mxu0
    %v1730 = vadd.f32 %v400, %v1729
    %v1731 = vpop.f32.mrb[0].mxu0
    %v1732 = vpop.f32.mrb[0].mxu0
    %1733 = vdwg.mxu0
    %1734 = vmatprep.subr.bf16.mxu0 %v1246
    %1735 = vmatpush1.bf16.msra.mxu0 %v1245
    %1736 = vmatprep.subr.bf16.mxu0 %v1250
    %1737 = vmatpush1.bf16.msra.mxu0 %v1249
    %1738 = vmatprep.subr.bf16.mxu0 %v1254
    %1739 = vmatpush1.bf16.msra.mxu0 %v1253
    %1740 = vmatprep.subr.bf16.mxu0 %v1258
    %1741 = vmatpush1.bf16.msra.mxu0 %v1257
    %1742 = vmatprep.subr.bf16.mxu0 %v1262
    %1743 = vmatpush1.bf16.msra.mxu0 %v1261
    %1744 = vmatprep.subr.bf16.mxu0 %v1266
    %1745 = vmatpush1.bf16.msra.mxu0 %v1265
    %1746 = vmatprep.subr.bf16.mxu0 %v1270
    %1747 = vmatpush1.bf16.msra.mxu0 %v1269
    %1748 = vmatprep.subr.bf16.mxu0 %v1274
    %1749 = vmatpush1.bf16.msra.mxu0 %v1273
    %1750 = vmatprep.subr.bf16.mxu0 %v1278
    %1751 = vmatpush1.bf16.msra.mxu0 %v1277
    %1752 = vmatprep.subr.bf16.mxu0 %v1282
    %1753 = vmatpush1.bf16.msra.mxu0 %v1281
    %1754 = vmatprep.subr.bf16.mxu0 %v1286
    %1755 = vmatpush1.bf16.msra.mxu0 %v1285
    %1756 = vmatprep.subr.bf16.mxu0 %v1290
    %1757 = vmatpush1.bf16.msra.mxu0 %v1289
    %1758 = vmatprep.subr.bf16.mxu0 %v1294
    %1759 = vmatpush1.bf16.msra.mxu0 %v1293
    %1760 = vmatprep.subr.bf16.mxu0 %v1298
    %1761 = vmatpush1.bf16.msra.mxu0 %v1297
    %1762 = vmatprep.subr.bf16.mxu0 %v1302
    %1763 = vmatpush1.bf16.msra.mxu0 %v1301
    %1764 = vmatprep.subr.bf16.mxu0 %v1306
    %1765 = vmatpush1.bf16.msra.mxu0 %v1305
    %1766 = vmatprep.mubr.bf16.mxu0 %v130
    %1767 = vmatmul.mubr.bf16.gmra.mrb[0].mxu0 %v129
    %v1768 = vpop.f32.mrb[0].mxu0
    %v1769 = vadd.f32 %v1728, %v1768
    %v1770 = vpop.f32.mrb[0].mxu0
    %v1771 = vadd.f32 %v1730, %v1770
    %v1772 = vpop.f32.mrb[0].mxu0
    %v1773 = vpop.f32.mrb[0].mxu0
    %1774 = vdwg.mxu0
    %1775 = vmatprep.subr.bf16.mxu0 %v1310
    %1776 = vmatpush1.bf16.msra.mxu0 %v1309
    %1777 = vmatprep.subr.bf16.mxu0 %v1314
    %1778 = vmatpush1.bf16.msra.mxu0 %v1313
    %1779 = vmatprep.subr.bf16.mxu0 %v1318
    %1780 = vmatpush1.bf16.msra.mxu0 %v1317
    %1781 = vmatprep.subr.bf16.mxu0 %v1322
    %1782 = vmatpush1.bf16.msra.mxu0 %v1321
    %1783 = vmatprep.subr.bf16.mxu0 %v1326
    %1784 = vmatpush1.bf16.msra.mxu0 %v1325
    %1785 = vmatprep.subr.bf16.mxu0 %v1330
    %1786 = vmatpush1.bf16.msra.mxu0 %v1329
    %1787 = vmatprep.subr.bf16.mxu0 %v1334
    %1788 = vmatpush1.bf16.msra.mxu0 %v1333
    %1789 = vmatprep.subr.bf16.mxu0 %v1338
    %1790 = vmatpush1.bf16.msra.mxu0 %v1337
    %1791 = vmatprep.subr.bf16.mxu0 %v1342
    %1792 = vmatpush1.bf16.msra.mxu0 %v1341
    %1793 = vmatprep.subr.bf16.mxu0 %v1346
    %1794 = vmatpush1.bf16.msra.mxu0 %v1345
    %1795 = vmatprep.subr.bf16.mxu0 %v1350
    %1796 = vmatpush1.bf16.msra.mxu0 %v1349
    %1797 = vmatprep.subr.bf16.mxu0 %v1354
    %1798 = vmatpush1.bf16.msra.mxu0 %v1353
    %1799 = vmatprep.subr.bf16.mxu0 %v1358
    %1800 = vmatpush1.bf16.msra.mxu0 %v1357
    %1801 = vmatprep.subr.bf16.mxu0 %v1362
    %1802 = vmatpush1.bf16.msra.mxu0 %v1361
    %1803 = vmatprep.subr.bf16.mxu0 %v1366
    %1804 = vmatpush1.bf16.msra.mxu0 %v1365
    %1805 = vmatprep.subr.bf16.mxu0 %v1370
    %1806 = vmatpush1.bf16.msra.mxu0 %v1369
    %1807 = vmatprep.mubr.bf16.mxu0 %v132
    %1808 = vmatmul.mubr.bf16.gmra.mrb[0].mxu0 %v131
    %v1809 = vpop.f32.mrb[0].mxu0
    %v1810 = vadd.f32 %v1769, %v1809
    %v1811 = vpop.f32.mrb[0].mxu0
    %v1812 = vadd.f32 %v1771, %v1811
    %v1813 = vpop.f32.mrb[0].mxu0
    %v1814 = vpop.f32.mrb[0].mxu0
    %1815 = vdwg.mxu0
    %1816 = vmatprep.subr.bf16.mxu0 %v1374
    %1817 = vmatpush1.bf16.msra.mxu0 %v1373
    %1818 = vmatprep.subr.bf16.mxu0 %v1378
    %1819 = vmatpush1.bf16.msra.mxu0 %v1377
    %1820 = vmatprep.subr.bf16.mxu0 %v1382
    %1821 = vmatpush1.bf16.msra.mxu0 %v1381
    %1822 = vmatprep.subr.bf16.mxu0 %v1386
    %1823 = vmatpush1.bf16.msra.mxu0 %v1385
    %1824 = vmatprep.subr.bf16.mxu0 %v1390
    %1825 = vmatpush1.bf16.msra.mxu0 %v1389
    %1826 = vmatprep.subr.bf16.mxu0 %v1394
    %1827 = vmatpush1.bf16.msra.mxu0 %v1393
    %1828 = vmatprep.subr.bf16.mxu0 %v1398
    %1829 = vmatpush1.bf16.msra.mxu0 %v1397
    %1830 = vmatprep.subr.bf16.mxu0 %v1402
    %1831 = vmatpush1.bf16.msra.mxu0 %v1401
    %1832 = vmatprep.subr.bf16.mxu0 %v1406
    %1833 = vmatpush1.bf16.msra.mxu0 %v1405
    %1834 = vmatprep.subr.bf16.mxu0 %v1410
    %1835 = vmatpush1.bf16.msra.mxu0 %v1409
    %1836 = vmatprep.subr.bf16.mxu0 %v1414
    %1837 = vmatpush1.bf16.msra.mxu0 %v1413
    %1838 = vmatprep.subr.bf16.mxu0 %v1418
    %1839 = vmatpush1.bf16.msra.mxu0 %v1417
    %1840 = vmatprep.subr.bf16.mxu0 %v1422
    %1841 = vmatpush1.bf16.msra.mxu0 %v1421
    %1842 = vmatprep.subr.bf16.mxu0 %v1426
    %1843 = vmatpush1.bf16.msra.mxu0 %v1425
    %1844 = vmatprep.subr.bf16.mxu0 %v1430
    %1845 = vmatpush1.bf16.msra.mxu0 %v1429
    %1846 = vmatprep.subr.bf16.mxu0 %v1434
    %1847 = vmatpush1.bf16.msra.mxu0 %v1433
    %1848 = vmatprep.mubr.bf16.mxu0 %v134
    %1849 = vmatmul.mubr.bf16.gmra.mrb[0].mxu0 %v133
    %v1850 = vpop.f32.mrb[0].mxu0
    %v1851 = vadd.f32 %v1810, %v1850
    %v1852 = vpop.f32.mrb[0].mxu0
    %v1853 = vadd.f32 %v1812, %v1852
    %v1854 = vpop.f32.mrb[0].mxu0
    %v1855 = vpop.f32.mrb[0].mxu0
    %1856 = vdwg.mxu0
    %1857 = vmatprep.subr.bf16.mxu0 %v1184
    %1858 = vmatpush1.bf16.msra.mxu0 %v1183
    %1859 = vmatprep.subr.bf16.mxu0 %v1188
    %1860 = vmatpush1.bf16.msra.mxu0 %v1187
    %1861 = vmatprep.subr.bf16.mxu0 %v1192
    %1862 = vmatpush1.bf16.msra.mxu0 %v1191
    %1863 = vmatprep.subr.bf16.mxu0 %v1196
    %1864 = vmatpush1.bf16.msra.mxu0 %v1195
    %1865 = vmatprep.subr.bf16.mxu0 %v1200
    %1866 = vmatpush1.bf16.msra.mxu0 %v1199
    %1867 = vmatprep.subr.bf16.mxu0 %v1204
    %1868 = vmatpush1.bf16.msra.mxu0 %v1203
    %1869 = vmatprep.subr.bf16.mxu0 %v1208
    %1870 = vmatpush1.bf16.msra.mxu0 %v1207
    %1871 = vmatprep.subr.bf16.mxu0 %v1212
    %1872 = vmatpush1.bf16.msra.mxu0 %v1211
    %1873 = vmatprep.subr.bf16.mxu0 %v1216
    %1874 = vmatpush1.bf16.msra.mxu0 %v1215
    %1875 = vmatprep.subr.bf16.mxu0 %v1220
    %1876 = vmatpush1.bf16.msra.mxu0 %v1219
    %1877 = vmatprep.subr.bf16.mxu0 %v1224
    %1878 = vmatpush1.bf16.msra.mxu0 %v1223
    %1879 = vmatprep.subr.bf16.mxu0 %v1228
    %1880 = vmatpush1.bf16.msra.mxu0 %v1227
    %1881 = vmatprep.subr.bf16.mxu0 %v1232
    %1882 = vmatpush1.bf16.msra.mxu0 %v1231
    %1883 = vmatprep.subr.bf16.mxu0 %v1236
    %1884 = vmatpush1.bf16.msra.mxu0 %v1235
    %1885 = vmatprep.subr.bf16.mxu0 %v1240
    %1886 = vmatpush1.bf16.msra.mxu0 %v1239
    %1887 = vmatprep.subr.bf16.mxu0 %v1244
    %1888 = vmatpush1.bf16.msra.mxu0 %v1243
    %1889 = vmatprep.mubr.bf16.mxu0 %v128
    %1890 = vmatmul.mubr.bf16.gmra.mrb[0].mxu0 %v127
    %v1891 = vpop.f32.mrb[0].mxu0
    %v1892 = vadd.f32 %v404, %v1891
    %v1893 = vpop.f32.mrb[0].mxu0
    %v1894 = vadd.f32 %v408, %v1893
    %v1895 = vpop.f32.mrb[0].mxu0
    %v1896 = vpop.f32.mrb[0].mxu0
    %1897 = vdwg.mxu0
    %1898 = vmatprep.subr.bf16.mxu0 %v1248
    %1899 = vmatpush1.bf16.msra.mxu0 %v1247
    %1900 = vmatprep.subr.bf16.mxu0 %v1252
    %1901 = vmatpush1.bf16.msra.mxu0 %v1251
    %1902 = vmatprep.subr.bf16.mxu0 %v1256
    %1903 = vmatpush1.bf16.msra.mxu0 %v1255
    %1904 = vmatprep.subr.bf16.mxu0 %v1260
    %1905 = vmatpush1.bf16.msra.mxu0 %v1259
    %1906 = vmatprep.subr.bf16.mxu0 %v1264
    %1907 = vmatpush1.bf16.msra.mxu0 %v1263
    %1908 = vmatprep.subr.bf16.mxu0 %v1268
    %1909 = vmatpush1.bf16.msra.mxu0 %v1267
    %1910 = vmatprep.subr.bf16.mxu0 %v1272
    %1911 = vmatpush1.bf16.msra.mxu0 %v1271
    %1912 = vmatprep.subr.bf16.mxu0 %v1276
    %1913 = vmatpush1.bf16.msra.mxu0 %v1275
    %1914 = vmatprep.subr.bf16.mxu0 %v1280
    %1915 = vmatpush1.bf16.msra.mxu0 %v1279
    %1916 = vmatprep.subr.bf16.mxu0 %v1284
    %1917 = vmatpush1.bf16.msra.mxu0 %v1283
    %1918 = vmatprep.subr.bf16.mxu0 %v1288
    %1919 = vmatpush1.bf16.msra.mxu0 %v1287
    %1920 = vmatprep.subr.bf16.mxu0 %v1292
    %1921 = vmatpush1.bf16.msra.mxu0 %v1291
    %1922 = vmatprep.subr.bf16.mxu0 %v1296
    %1923 = vmatpush1.bf16.msra.mxu0 %v1295
    %1924 = vmatprep.subr.bf16.mxu0 %v1300
    %1925 = vmatpush1.bf16.msra.mxu0 %v1299
    %1926 = vmatprep.subr.bf16.mxu0 %v1304
    %1927 = vmatpush1.bf16.msra.mxu0 %v1303
    %1928 = vmatprep.subr.bf16.mxu0 %v1308
    %1929 = vmatpush1.bf16.msra.mxu0 %v1307
    %1930 = vmatprep.mubr.bf16.mxu0 %v130
    %1931 = vmatmul.mubr.bf16.gmra.mrb[0].mxu0 %v129
    %v1932 = vpop.f32.mrb[0].mxu0
    %v1933 = vadd.f32 %v1892, %v1932
    %v1934 = vpop.f32.mrb[0].mxu0
    %v1935 = vadd.f32 %v1894, %v1934
    %v1936 = vpop.f32.mrb[0].mxu0
    %v1937 = vpop.f32.mrb[0].mxu0
    %1938 = vdwg.mxu0
    %1939 = vmatprep.subr.bf16.mxu0 %v1312
    %1940 = vmatpush1.bf16.msra.mxu0 %v1311
    %1941 = vmatprep.subr.bf16.mxu0 %v1316
    %1942 = vmatpush1.bf16.msra.mxu0 %v1315
    %1943 = vmatprep.subr.bf16.mxu0 %v1320
    %1944 = vmatpush1.bf16.msra.mxu0 %v1319
    %1945 = vmatprep.subr.bf16.mxu0 %v1324
    %1946 = vmatpush1.bf16.msra.mxu0 %v1323
    %1947 = vmatprep.subr.bf16.mxu0 %v1328
    %1948 = vmatpush1.bf16.msra.mxu0 %v1327
    %1949 = vmatprep.subr.bf16.mxu0 %v1332
    %1950 = vmatpush1.bf16.msra.mxu0 %v1331
    %1951 = vmatprep.subr.bf16.mxu0 %v1336
    %1952 = vmatpush1.bf16.msra.mxu0 %v1335
    %1953 = vmatprep.subr.bf16.mxu0 %v1340
    %1954 = vmatpush1.bf16.msra.mxu0 %v1339
    %1955 = vmatprep.subr.bf16.mxu0 %v1344
    %1956 = vmatpush1.bf16.msra.mxu0 %v1343
    %1957 = vmatprep.subr.bf16.mxu0 %v1348
    %1958 = vmatpush1.bf16.msra.mxu0 %v1347
    %1959 = vmatprep.subr.bf16.mxu0 %v1352
    %1960 = vmatpush1.bf16.msra.mxu0 %v1351
    %1961 = vmatprep.subr.bf16.mxu0 %v1356
    %1962 = vmatpush1.bf16.msra.mxu0 %v1355
    %1963 = vmatprep.subr.bf16.mxu0 %v1360
    %1964 = vmatpush1.bf16.msra.mxu0 %v1359
    %1965 = vmatprep.subr.bf16.mxu0 %v1364
    %1966 = vmatpush1.bf16.msra.mxu0 %v1363
    %1967 = vmatprep.subr.bf16.mxu0 %v1368
    %1968 = vmatpush1.bf16.msra.mxu0 %v1367
    %1969 = vmatprep.subr.bf16.mxu0 %v1372
    %1970 = vmatpush1.bf16.msra.mxu0 %v1371
    %1971 = vmatprep.mubr.bf16.mxu0 %v132
    %1972 = vmatmul.mubr.bf16.gmra.mrb[0].mxu0 %v131
    %v1973 = vpop.f32.mrb[0].mxu0
    %v1974 = vadd.f32 %v1933, %v1973
    %v1975 = vpop.f32.mrb[0].mxu0
    %v1976 = vadd.f32 %v1935, %v1975
    %v1977 = vpop.f32.mrb[0].mxu0
    %v1978 = vpop.f32.mrb[0].mxu0
    %1979 = vdwg.mxu0
    %1980 = vmatprep.subr.bf16.mxu0 %v1376
    %1981 = vmatpush1.bf16.msra.mxu0 %v1375
    %1982 = vmatprep.subr.bf16.mxu0 %v1380
    %1983 = vmatpush1.bf16.msra.mxu0 %v1379
    %1984 = vmatprep.subr.bf16.mxu0 %v1384
    %1985 = vmatpush1.bf16.msra.mxu0 %v1383
    %1986 = vmatprep.subr.bf16.mxu0 %v1388
    %1987 = vmatpush1.bf16.msra.mxu0 %v1387
    %1988 = vmatprep.subr.bf16.mxu0 %v1392
    %1989 = vmatpush1.bf16.msra.mxu0 %v1391
    %1990 = vmatprep.subr.bf16.mxu0 %v1396
    %1991 = vmatpush1.bf16.msra.mxu0 %v1395
    %1992 = vmatprep.subr.bf16.mxu0 %v1400
    %1993 = vmatpush1.bf16.msra.mxu0 %v1399
    %1994 = vmatprep.subr.bf16.mxu0 %v1404
    %1995 = vmatpush1.bf16.msra.mxu0 %v1403
    %1996 = vmatprep.subr.bf16.mxu0 %v1408
    %1997 = vmatpush1.bf16.msra.mxu0 %v1407
    %1998 = vmatprep.subr.bf16.mxu0 %v1412
    %1999 = vmatpush1.bf16.msra.mxu0 %v1411
    %2000 = vmatprep.subr.bf16.mxu0 %v1416
    %2001 = vmatpush1.bf16.msra.mxu0 %v1415
    %2002 = vmatprep.subr.bf16.mxu0 %v1420
    %2003 = vmatpush1.bf16.msra.mxu0 %v1419
    %2004 = vmatprep.subr.bf16.mxu0 %v1424
    %2005 = vmatpush1.bf16.msra.mxu0 %v1423
    %2006 = vmatprep.subr.bf16.mxu0 %v1428
    %2007 = vmatpush1.bf16.msra.mxu0 %v1427
    %2008 = vmatprep.subr.bf16.mxu0 %v1432
    %2009 = vmatpush1.bf16.msra.mxu0 %v1431
    %2010 = vmatprep.subr.bf16.mxu0 %v1436
    %2011 = vmatpush1.bf16.msra.mxu0 %v1435
    %2012 = vmatprep.mubr.bf16.mxu0 %v134
    %2013 = vmatmul.mubr.bf16.gmra.mrb[0].mxu0 %v133
    %v2014 = vpop.f32.mrb[0].mxu0
    %v2015 = vadd.f32 %v1974, %v2014
    %v2016 = vpop.f32.mrb[0].mxu0
    %v2017 = vadd.f32 %v1976, %v2016
    %v2018 = vpop.f32.mrb[0].mxu0
    %v2019 = vpop.f32.mrb[0].mxu0
    %2020 = vdwg.mxu0
    %v2021 = vmax.f32 %v1851, 0.0
    %v2022 = vmax.f32 %v1853, 0.0
    %v2023 = vmax.f32 %v2015, 0.0
    %v2024 = vmax.f32 %v2017, 0.0
    %v2025 = vpack.c.bf16 %v2021, %v2021
    %v2026 = vpack.c.bf16 %v2022, %v2022
    %v2027 = vpack.c.bf16 %v2023, %v2023
    %v2028 = vpack.c.bf16 %v2024, %v2024
    %v2029 = vld [vmem:[#allocation7] sm:$0xff]
    %v2030 = vld [vmem:[#allocation7 + $0x8] sm:$0xff]
    %v2031 = vld [vmem:[#allocation7 + $0x10] sm:$0xff]
    %v2032 = vld [vmem:[#allocation7 + $0x18] sm:$0xff]
    %v2033 = vld [vmem:[#allocation7 + $0x20] sm:$0xff]
    %v2034 = vld [vmem:[#allocation7 + $0x28] sm:$0xff]
    %v2035 = vld [vmem:[#allocation7 + $0x30] sm:$0xff]
    %v2036 = vld [vmem:[#allocation7 + $0x38] sm:$0xff]
    %v2037 = vld [vmem:[#allocation7 + $0x40] sm:$0xff]
    %v2038 = vld [vmem:[#allocation7 + $0x48] sm:$0xff]
    %v2039 = vld [vmem:[#allocation7 + $0x50] sm:$0xff]
    %v2040 = vld [vmem:[#allocation7 + $0x58] sm:$0xff]
    %v2041 = vld [vmem:[#allocation7 + $0x60] sm:$0xff]
    %v2042 = vld [vmem:[#allocation7 + $0x68] sm:$0xff]
    %v2043 = vld [vmem:[#allocation7 + $0x70] sm:$0xff]
    %v2044 = vld [vmem:[#allocation7 + $0x78] sm:$0xff]
    %v2045 = vld [vmem:[#allocation7 + $0x80] sm:$0xff]
    %v2046 = vld [vmem:[#allocation7 + $0x88] sm:$0xff]
    %v2047 = vld [vmem:[#allocation7 + $0x90] sm:$0xff]
    %v2048 = vld [vmem:[#allocation7 + $0x98] sm:$0xff]
    %v2049 = vld [vmem:[#allocation7 + $0xa0] sm:$0xff]
    %v2050 = vld [vmem:[#allocation7 + $0xa8] sm:$0xff]
    %v2051 = vld [vmem:[#allocation7 + $0xb0] sm:$0xff]
    %v2052 = vld [vmem:[#allocation7 + $0xb8] sm:$0xff]
    %v2053 = vld [vmem:[#allocation7 + $0xc0] sm:$0xff]
    %v2054 = vld [vmem:[#allocation7 + $0xc8] sm:$0xff]
    %v2055 = vld [vmem:[#allocation7 + $0xd0] sm:$0xff]
    %v2056 = vld [vmem:[#allocation7 + $0xd8] sm:$0xff]
    %v2057 = vld [vmem:[#allocation7 + $0xe0] sm:$0xff]
    %v2058 = vld [vmem:[#allocation7 + $0xe8] sm:$0xff]
    %v2059 = vld [vmem:[#allocation7 + $0xf0] sm:$0xff]
    %v2060 = vld [vmem:[#allocation7 + $0xf8] sm:$0xff]
    %v2061 = vld [vmem:[#allocation7 + $0x100] sm:$0xff]
    %v2062 = vld [vmem:[#allocation7 + $0x108] sm:$0xff]
    %v2063 = vld [vmem:[#allocation7 + $0x110] sm:$0xff]
    %v2064 = vld [vmem:[#allocation7 + $0x118] sm:$0xff]
    %v2065 = vld [vmem:[#allocation7 + $0x120] sm:$0xff]
    %v2066 = vld [vmem:[#allocation7 + $0x128] sm:$0xff]
    %v2067 = vld [vmem:[#allocation7 + $0x130] sm:$0xff]
    %v2068 = vld [vmem:[#allocation7 + $0x138] sm:$0xff]
    %v2069 = vld [vmem:[#allocation7 + $0x140] sm:$0xff]
    %v2070 = vld [vmem:[#allocation7 + $0x148] sm:$0xff]
    %v2071 = vld [vmem:[#allocation7 + $0x150] sm:$0xff]
    %v2072 = vld [vmem:[#allocation7 + $0x158] sm:$0xff]
    %v2073 = vld [vmem:[#allocation7 + $0x160] sm:$0xff]
    %v2074 = vld [vmem:[#allocation7 + $0x168] sm:$0xff]
    %v2075 = vld [vmem:[#allocation7 + $0x170] sm:$0xff]
    %v2076 = vld [vmem:[#allocation7 + $0x178] sm:$0xff]
    %v2077 = vld [vmem:[#allocation7 + $0x180] sm:$0xff]
    %v2078 = vld [vmem:[#allocation7 + $0x188] sm:$0xff]
    %v2079 = vld [vmem:[#allocation7 + $0x190] sm:$0xff]
    %v2080 = vld [vmem:[#allocation7 + $0x198] sm:$0xff]
    %v2081 = vld [vmem:[#allocation7 + $0x1a0] sm:$0xff]
    %v2082 = vld [vmem:[#allocation7 + $0x1a8] sm:$0xff]
    %v2083 = vld [vmem:[#allocation7 + $0x1b0] sm:$0xff]
    %v2084 = vld [vmem:[#allocation7 + $0x1b8] sm:$0xff]
    %v2085 = vld [vmem:[#allocation7 + $0x1c0] sm:$0xff]
    %v2086 = vld [vmem:[#allocation7 + $0x1c8] sm:$0xff]
    %v2087 = vld [vmem:[#allocation7 + $0x1d0] sm:$0xff]
    %v2088 = vld [vmem:[#allocation7 + $0x1d8] sm:$0xff]
    %v2089 = vld [vmem:[#allocation7 + $0x1e0] sm:$0xff]
    %v2090 = vld [vmem:[#allocation7 + $0x1e8] sm:$0xff]
    %v2091 = vld [vmem:[#allocation7 + $0x1f0] sm:$0xff]
    %v2092 = vld [vmem:[#allocation7 + $0x1f8] sm:$0xff]
    %v2093 = vld [vmem:[#allocation7 + $0x200] sm:$0xff]
    %v2094 = vld [vmem:[#allocation7 + $0x208] sm:$0xff]
    %v2095 = vld [vmem:[#allocation7 + $0x210] sm:$0xff]
    %v2096 = vld [vmem:[#allocation7 + $0x218] sm:$0xff]
    %v2097 = vld [vmem:[#allocation7 + $0x220] sm:$0xff]
    %v2098 = vld [vmem:[#allocation7 + $0x228] sm:$0xff]
    %v2099 = vld [vmem:[#allocation7 + $0x230] sm:$0xff]
    %v2100 = vld [vmem:[#allocation7 + $0x238] sm:$0xff]
    %v2101 = vld [vmem:[#allocation7 + $0x240] sm:$0xff]
    %v2102 = vld [vmem:[#allocation7 + $0x248] sm:$0xff]
    %v2103 = vld [vmem:[#allocation7 + $0x250] sm:$0xff]
    %v2104 = vld [vmem:[#allocation7 + $0x258] sm:$0xff]
    %v2105 = vld [vmem:[#allocation7 + $0x260] sm:$0xff]
    %v2106 = vld [vmem:[#allocation7 + $0x268] sm:$0xff]
    %v2107 = vld [vmem:[#allocation7 + $0x270] sm:$0xff]
    %v2108 = vld [vmem:[#allocation7 + $0x278] sm:$0xff]
    %v2109 = vld [vmem:[#allocation7 + $0x280] sm:$0xff]
    %v2110 = vld [vmem:[#allocation7 + $0x288] sm:$0xff]
    %v2111 = vld [vmem:[#allocation7 + $0x290] sm:$0xff]
    %v2112 = vld [vmem:[#allocation7 + $0x298] sm:$0xff]
    %v2113 = vld [vmem:[#allocation7 + $0x2a0] sm:$0xff]
    %v2114 = vld [vmem:[#allocation7 + $0x2a8] sm:$0xff]
    %v2115 = vld [vmem:[#allocation7 + $0x2b0] sm:$0xff]
    %v2116 = vld [vmem:[#allocation7 + $0x2b8] sm:$0xff]
    %v2117 = vld [vmem:[#allocation7 + $0x2c0] sm:$0xff]
    %v2118 = vld [vmem:[#allocation7 + $0x2c8] sm:$0xff]
    %v2119 = vld [vmem:[#allocation7 + $0x2d0] sm:$0xff]
    %v2120 = vld [vmem:[#allocation7 + $0x2d8] sm:$0xff]
    %v2121 = vld [vmem:[#allocation7 + $0x2e0] sm:$0xff]
    %v2122 = vld [vmem:[#allocation7 + $0x2e8] sm:$0xff]
    %v2123 = vld [vmem:[#allocation7 + $0x2f0] sm:$0xff]
    %v2124 = vld [vmem:[#allocation7 + $0x2f8] sm:$0xff]
    %v2125 = vld [vmem:[#allocation7 + $0x300] sm:$0xff]
    %v2126 = vld [vmem:[#allocation7 + $0x308] sm:$0xff]
    %v2127 = vld [vmem:[#allocation7 + $0x310] sm:$0xff]
    %v2128 = vld [vmem:[#allocation7 + $0x318] sm:$0xff]
    %v2129 = vld [vmem:[#allocation7 + $0x320] sm:$0xff]
    %v2130 = vld [vmem:[#allocation7 + $0x328] sm:$0xff]
    %v2131 = vld [vmem:[#allocation7 + $0x330] sm:$0xff]
    %v2132 = vld [vmem:[#allocation7 + $0x338] sm:$0xff]
    %v2133 = vld [vmem:[#allocation7 + $0x340] sm:$0xff]
    %v2134 = vld [vmem:[#allocation7 + $0x348] sm:$0xff]
    %v2135 = vld [vmem:[#allocation7 + $0x350] sm:$0xff]
    %v2136 = vld [vmem:[#allocation7 + $0x358] sm:$0xff]
    %v2137 = vld [vmem:[#allocation7 + $0x360] sm:$0xff]
    %v2138 = vld [vmem:[#allocation7 + $0x368] sm:$0xff]
    %v2139 = vld [vmem:[#allocation7 + $0x370] sm:$0xff]
    %v2140 = vld [vmem:[#allocation7 + $0x378] sm:$0xff]
    %v2141 = vld [vmem:[#allocation7 + $0x380] sm:$0xff]
    %v2142 = vld [vmem:[#allocation7 + $0x388] sm:$0xff]
    %v2143 = vld [vmem:[#allocation7 + $0x390] sm:$0xff]
    %v2144 = vld [vmem:[#allocation7 + $0x398] sm:$0xff]
    %v2145 = vld [vmem:[#allocation7 + $0x3a0] sm:$0xff]
    %v2146 = vld [vmem:[#allocation7 + $0x3a8] sm:$0xff]
    %v2147 = vld [vmem:[#allocation7 + $0x3b0] sm:$0xff]
    %v2148 = vld [vmem:[#allocation7 + $0x3b8] sm:$0xff]
    %v2149 = vld [vmem:[#allocation7 + $0x3c0] sm:$0xff]
    %v2150 = vld [vmem:[#allocation7 + $0x3c8] sm:$0xff]
    %v2151 = vld [vmem:[#allocation7 + $0x3d0] sm:$0xff]
    %v2152 = vld [vmem:[#allocation7 + $0x3d8] sm:$0xff]
    %v2153 = vld [vmem:[#allocation7 + $0x3e0] sm:$0xff]
    %v2154 = vld [vmem:[#allocation7 + $0x3e8] sm:$0xff]
    %v2155 = vld [vmem:[#allocation7 + $0x3f0] sm:$0xff]
    %v2156 = vld [vmem:[#allocation7 + $0x3f8] sm:$0xff]
    %v2157 = vld [vmem:[%s4] sm:$0xf]
    %v2159 = vlaneseq
    %v2160 = vshrl.u32 %v2159, 7
    %v2161 = vsub.s32 0, %v2160
    %v2162 = vrot.slane %v2157, %v2161
    %v2163 = vlaneseq
    %v2164 = vshrl.u32 %v2163, 7
    %v2165 = vsub.s32 1, %v2164
    %v2166 = vrot.slane %v2157, %v2165
    %v2167 = vlaneseq
    %v2168 = vshrl.u32 %v2167, 7
    %v2169 = vsub.s32 2, %v2168
    %v2170 = vrot.slane %v2157, %v2169
    %v2171 = vlaneseq
    %v2172 = vshrl.u32 %v2171, 7
    %v2173 = vsub.s32 3, %v2172
    %v2174 = vrot.slane %v2157, %v2173
    %v2307 = vunpack.c.l.b16 %v2029
    %v2308 = vunpack.c.h.b16 %v2029
    %v2309 = vunpack.c.l.b16 %v2030
    %v2310 = vunpack.c.h.b16 %v2030
    %v2311 = vunpack.c.l.b16 %v2031
    %v2312 = vunpack.c.h.b16 %v2031
    %v2313 = vunpack.c.l.b16 %v2032
    %v2314 = vunpack.c.h.b16 %v2032
    %v2315 = vunpack.c.l.b16 %v2033
    %v2316 = vunpack.c.h.b16 %v2033
    %v2317 = vunpack.c.l.b16 %v2034
    %v2318 = vunpack.c.h.b16 %v2034
    %v2319 = vunpack.c.l.b16 %v2035
    %v2320 = vunpack.c.h.b16 %v2035
    %v2321 = vunpack.c.l.b16 %v2036
    %v2322 = vunpack.c.h.b16 %v2036
    %v2323 = vunpack.c.l.b16 %v2037
    %v2324 = vunpack.c.h.b16 %v2037
    %v2325 = vunpack.c.l.b16 %v2038
    %v2326 = vunpack.c.h.b16 %v2038
    %v2327 = vunpack.c.l.b16 %v2039
    %v2328 = vunpack.c.h.b16 %v2039
    %v2329 = vunpack.c.l.b16 %v2040
    %v2330 = vunpack.c.h.b16 %v2040
    %v2331 = vunpack.c.l.b16 %v2041
    %v2332 = vunpack.c.h.b16 %v2041
    %v2333 = vunpack.c.l.b16 %v2042
    %v2334 = vunpack.c.h.b16 %v2042
    %v2335 = vunpack.c.l.b16 %v2043
    %v2336 = vunpack.c.h.b16 %v2043
    %v2337 = vunpack.c.l.b16 %v2044
    %v2338 = vunpack.c.h.b16 %v2044
    %v2339 = vunpack.c.l.b16 %v2045
    %v2340 = vunpack.c.h.b16 %v2045
    %v2341 = vunpack.c.l.b16 %v2046
    %v2342 = vunpack.c.h.b16 %v2046
    %v2343 = vunpack.c.l.b16 %v2047
    %v2344 = vunpack.c.h.b16 %v2047
    %v2345 = vunpack.c.l.b16 %v2048
    %v2346 = vunpack.c.h.b16 %v2048
    %v2347 = vunpack.c.l.b16 %v2049
    %v2348 = vunpack.c.h.b16 %v2049
    %v2349 = vunpack.c.l.b16 %v2050
    %v2350 = vunpack.c.h.b16 %v2050
    %v2351 = vunpack.c.l.b16 %v2051
    %v2352 = vunpack.c.h.b16 %v2051
    %v2353 = vunpack.c.l.b16 %v2052
    %v2354 = vunpack.c.h.b16 %v2052
    %v2355 = vunpack.c.l.b16 %v2053
    %v2356 = vunpack.c.h.b16 %v2053
    %v2357 = vunpack.c.l.b16 %v2054
    %v2358 = vunpack.c.h.b16 %v2054
    %v2359 = vunpack.c.l.b16 %v2055
    %v2360 = vunpack.c.h.b16 %v2055
    %v2361 = vunpack.c.l.b16 %v2056
    %v2362 = vunpack.c.h.b16 %v2056
    %v2363 = vunpack.c.l.b16 %v2057
    %v2364 = vunpack.c.h.b16 %v2057
    %v2365 = vunpack.c.l.b16 %v2058
    %v2366 = vunpack.c.h.b16 %v2058
    %v2367 = vunpack.c.l.b16 %v2059
    %v2368 = vunpack.c.h.b16 %v2059
    %v2369 = vunpack.c.l.b16 %v2060
    %v2370 = vunpack.c.h.b16 %v2060
    %v2371 = vunpack.c.l.b16 %v2061
    %v2372 = vunpack.c.h.b16 %v2061
    %v2373 = vunpack.c.l.b16 %v2062
    %v2374 = vunpack.c.h.b16 %v2062
    %v2375 = vunpack.c.l.b16 %v2063
    %v2376 = vunpack.c.h.b16 %v2063
    %v2377 = vunpack.c.l.b16 %v2064
    %v2378 = vunpack.c.h.b16 %v2064
    %v2379 = vunpack.c.l.b16 %v2065
    %v2380 = vunpack.c.h.b16 %v2065
    %v2381 = vunpack.c.l.b16 %v2066
    %v2382 = vunpack.c.h.b16 %v2066
    %v2383 = vunpack.c.l.b16 %v2067
    %v2384 = vunpack.c.h.b16 %v2067
    %v2385 = vunpack.c.l.b16 %v2068
    %v2386 = vunpack.c.h.b16 %v2068
    %v2387 = vunpack.c.l.b16 %v2069
    %v2388 = vunpack.c.h.b16 %v2069
    %v2389 = vunpack.c.l.b16 %v2070
    %v2390 = vunpack.c.h.b16 %v2070
    %v2391 = vunpack.c.l.b16 %v2071
    %v2392 = vunpack.c.h.b16 %v2071
    %v2393 = vunpack.c.l.b16 %v2072
    %v2394 = vunpack.c.h.b16 %v2072
    %v2395 = vunpack.c.l.b16 %v2073
    %v2396 = vunpack.c.h.b16 %v2073
    %v2397 = vunpack.c.l.b16 %v2074
    %v2398 = vunpack.c.h.b16 %v2074
    %v2399 = vunpack.c.l.b16 %v2075
    %v2400 = vunpack.c.h.b16 %v2075
    %v2401 = vunpack.c.l.b16 %v2076
    %v2402 = vunpack.c.h.b16 %v2076
    %v2403 = vunpack.c.l.b16 %v2077
    %v2404 = vunpack.c.h.b16 %v2077
    %v2405 = vunpack.c.l.b16 %v2078
    %v2406 = vunpack.c.h.b16 %v2078
    %v2407 = vunpack.c.l.b16 %v2079
    %v2408 = vunpack.c.h.b16 %v2079
    %v2409 = vunpack.c.l.b16 %v2080
    %v2410 = vunpack.c.h.b16 %v2080
    %v2411 = vunpack.c.l.b16 %v2081
    %v2412 = vunpack.c.h.b16 %v2081
    %v2413 = vunpack.c.l.b16 %v2082
    %v2414 = vunpack.c.h.b16 %v2082
    %v2415 = vunpack.c.l.b16 %v2083
    %v2416 = vunpack.c.h.b16 %v2083
    %v2417 = vunpack.c.l.b16 %v2084
    %v2418 = vunpack.c.h.b16 %v2084
    %v2419 = vunpack.c.l.b16 %v2085
    %v2420 = vunpack.c.h.b16 %v2085
    %v2421 = vunpack.c.l.b16 %v2086
    %v2422 = vunpack.c.h.b16 %v2086
    %v2423 = vunpack.c.l.b16 %v2087
    %v2424 = vunpack.c.h.b16 %v2087
    %v2425 = vunpack.c.l.b16 %v2088
    %v2426 = vunpack.c.h.b16 %v2088
    %v2427 = vunpack.c.l.b16 %v2089
    %v2428 = vunpack.c.h.b16 %v2089
    %v2429 = vunpack.c.l.b16 %v2090
    %v2430 = vunpack.c.h.b16 %v2090
    %v2431 = vunpack.c.l.b16 %v2091
    %v2432 = vunpack.c.h.b16 %v2091
    %v2433 = vunpack.c.l.b16 %v2092
    %v2434 = vunpack.c.h.b16 %v2092
    %v2435 = vunpack.c.l.b16 %v2093
    %v2436 = vunpack.c.h.b16 %v2093
    %v2437 = vunpack.c.l.b16 %v2094
    %v2438 = vunpack.c.h.b16 %v2094
    %v2439 = vunpack.c.l.b16 %v2095
    %v2440 = vunpack.c.h.b16 %v2095
    %v2441 = vunpack.c.l.b16 %v2096
    %v2442 = vunpack.c.h.b16 %v2096
    %v2443 = vunpack.c.l.b16 %v2097
    %v2444 = vunpack.c.h.b16 %v2097
    %v2445 = vunpack.c.l.b16 %v2098
    %v2446 = vunpack.c.h.b16 %v2098
    %v2447 = vunpack.c.l.b16 %v2099
    %v2448 = vunpack.c.h.b16 %v2099
    %v2449 = vunpack.c.l.b16 %v2100
    %v2450 = vunpack.c.h.b16 %v2100
    %v2451 = vunpack.c.l.b16 %v2101
    %v2452 = vunpack.c.h.b16 %v2101
    %v2453 = vunpack.c.l.b16 %v2102
    %v2454 = vunpack.c.h.b16 %v2102
    %v2455 = vunpack.c.l.b16 %v2103
    %v2456 = vunpack.c.h.b16 %v2103
    %v2457 = vunpack.c.l.b16 %v2104
    %v2458 = vunpack.c.h.b16 %v2104
    %v2459 = vunpack.c.l.b16 %v2105
    %v2460 = vunpack.c.h.b16 %v2105
    %v2461 = vunpack.c.l.b16 %v2106
    %v2462 = vunpack.c.h.b16 %v2106
    %v2463 = vunpack.c.l.b16 %v2107
    %v2464 = vunpack.c.h.b16 %v2107
    %v2465 = vunpack.c.l.b16 %v2108
    %v2466 = vunpack.c.h.b16 %v2108
    %v2467 = vunpack.c.l.b16 %v2109
    %v2468 = vunpack.c.h.b16 %v2109
    %v2469 = vunpack.c.l.b16 %v2110
    %v2470 = vunpack.c.h.b16 %v2110
    %v2471 = vunpack.c.l.b16 %v2111
    %v2472 = vunpack.c.h.b16 %v2111
    %v2473 = vunpack.c.l.b16 %v2112
    %v2474 = vunpack.c.h.b16 %v2112
    %v2475 = vunpack.c.l.b16 %v2113
    %v2476 = vunpack.c.h.b16 %v2113
    %v2477 = vunpack.c.l.b16 %v2114
    %v2478 = vunpack.c.h.b16 %v2114
    %v2479 = vunpack.c.l.b16 %v2115
    %v2480 = vunpack.c.h.b16 %v2115
    %v2481 = vunpack.c.l.b16 %v2116
    %v2482 = vunpack.c.h.b16 %v2116
    %v2483 = vunpack.c.l.b16 %v2117
    %v2484 = vunpack.c.h.b16 %v2117
    %v2485 = vunpack.c.l.b16 %v2118
    %v2486 = vunpack.c.h.b16 %v2118
    %v2487 = vunpack.c.l.b16 %v2119
    %v2488 = vunpack.c.h.b16 %v2119
    %v2489 = vunpack.c.l.b16 %v2120
    %v2490 = vunpack.c.h.b16 %v2120
    %v2491 = vunpack.c.l.b16 %v2121
    %v2492 = vunpack.c.h.b16 %v2121
    %v2493 = vunpack.c.l.b16 %v2122
    %v2494 = vunpack.c.h.b16 %v2122
    %v2495 = vunpack.c.l.b16 %v2123
    %v2496 = vunpack.c.h.b16 %v2123
    %v2497 = vunpack.c.l.b16 %v2124
    %v2498 = vunpack.c.h.b16 %v2124
    %v2499 = vunpack.c.l.b16 %v2125
    %v2500 = vunpack.c.h.b16 %v2125
    %v2501 = vunpack.c.l.b16 %v2126
    %v2502 = vunpack.c.h.b16 %v2126
    %v2503 = vunpack.c.l.b16 %v2127
    %v2504 = vunpack.c.h.b16 %v2127
    %v2505 = vunpack.c.l.b16 %v2128
    %v2506 = vunpack.c.h.b16 %v2128
    %v2507 = vunpack.c.l.b16 %v2129
    %v2508 = vunpack.c.h.b16 %v2129
    %v2509 = vunpack.c.l.b16 %v2130
    %v2510 = vunpack.c.h.b16 %v2130
    %v2511 = vunpack.c.l.b16 %v2131
    %v2512 = vunpack.c.h.b16 %v2131
    %v2513 = vunpack.c.l.b16 %v2132
    %v2514 = vunpack.c.h.b16 %v2132
    %v2515 = vunpack.c.l.b16 %v2133
    %v2516 = vunpack.c.h.b16 %v2133
    %v2517 = vunpack.c.l.b16 %v2134
    %v2518 = vunpack.c.h.b16 %v2134
    %v2519 = vunpack.c.l.b16 %v2135
    %v2520 = vunpack.c.h.b16 %v2135
    %v2521 = vunpack.c.l.b16 %v2136
    %v2522 = vunpack.c.h.b16 %v2136
    %v2523 = vunpack.c.l.b16 %v2137
    %v2524 = vunpack.c.h.b16 %v2137
    %v2525 = vunpack.c.l.b16 %v2138
    %v2526 = vunpack.c.h.b16 %v2138
    %v2527 = vunpack.c.l.b16 %v2139
    %v2528 = vunpack.c.h.b16 %v2139
    %v2529 = vunpack.c.l.b16 %v2140
    %v2530 = vunpack.c.h.b16 %v2140
    %v2531 = vunpack.c.l.b16 %v2141
    %v2532 = vunpack.c.h.b16 %v2141
    %v2533 = vunpack.c.l.b16 %v2142
    %v2534 = vunpack.c.h.b16 %v2142
    %v2535 = vunpack.c.l.b16 %v2143
    %v2536 = vunpack.c.h.b16 %v2143
    %v2537 = vunpack.c.l.b16 %v2144
    %v2538 = vunpack.c.h.b16 %v2144
    %v2539 = vunpack.c.l.b16 %v2145
    %v2540 = vunpack.c.h.b16 %v2145
    %v2541 = vunpack.c.l.b16 %v2146
    %v2542 = vunpack.c.h.b16 %v2146
    %v2543 = vunpack.c.l.b16 %v2147
    %v2544 = vunpack.c.h.b16 %v2147
    %v2545 = vunpack.c.l.b16 %v2148
    %v2546 = vunpack.c.h.b16 %v2148
    %v2547 = vunpack.c.l.b16 %v2149
    %v2548 = vunpack.c.h.b16 %v2149
    %v2549 = vunpack.c.l.b16 %v2150
    %v2550 = vunpack.c.h.b16 %v2150
    %v2551 = vunpack.c.l.b16 %v2151
    %v2552 = vunpack.c.h.b16 %v2151
    %v2553 = vunpack.c.l.b16 %v2152
    %v2554 = vunpack.c.h.b16 %v2152
    %v2555 = vunpack.c.l.b16 %v2153
    %v2556 = vunpack.c.h.b16 %v2153
    %v2557 = vunpack.c.l.b16 %v2154
    %v2558 = vunpack.c.h.b16 %v2154
    %v2559 = vunpack.c.l.b16 %v2155
    %v2560 = vunpack.c.h.b16 %v2155
    %v2561 = vunpack.c.l.b16 %v2156
    %v2562 = vunpack.c.h.b16 %v2156
    %v2563 = vpack.c.b16 %v2311, %v2307
    %v2564 = vpack.c.b16 %v2312, %v2308
    %v2565 = vpack.c.b16 %v2313, %v2309
    %v2566 = vpack.c.b16 %v2314, %v2310
    %v2567 = vpack.c.b16 %v2319, %v2315
    %v2568 = vpack.c.b16 %v2320, %v2316
    %v2569 = vpack.c.b16 %v2321, %v2317
    %v2570 = vpack.c.b16 %v2322, %v2318
    %v2571 = vpack.c.b16 %v2327, %v2323
    %v2572 = vpack.c.b16 %v2328, %v2324
    %v2573 = vpack.c.b16 %v2329, %v2325
    %v2574 = vpack.c.b16 %v2330, %v2326
    %v2575 = vpack.c.b16 %v2335, %v2331
    %v2576 = vpack.c.b16 %v2336, %v2332
    %v2577 = vpack.c.b16 %v2337, %v2333
    %v2578 = vpack.c.b16 %v2338, %v2334
    %v2579 = vpack.c.b16 %v2343, %v2339
    %v2580 = vpack.c.b16 %v2344, %v2340
    %v2581 = vpack.c.b16 %v2345, %v2341
    %v2582 = vpack.c.b16 %v2346, %v2342
    %v2583 = vpack.c.b16 %v2351, %v2347
    %v2584 = vpack.c.b16 %v2352, %v2348
    %v2585 = vpack.c.b16 %v2353, %v2349
    %v2586 = vpack.c.b16 %v2354, %v2350
    %v2587 = vpack.c.b16 %v2359, %v2355
    %v2588 = vpack.c.b16 %v2360, %v2356
    %v2589 = vpack.c.b16 %v2361, %v2357
    %v2590 = vpack.c.b16 %v2362, %v2358
    %v2591 = vpack.c.b16 %v2367, %v2363
    %v2592 = vpack.c.b16 %v2368, %v2364
    %v2593 = vpack.c.b16 %v2369, %v2365
    %v2594 = vpack.c.b16 %v2370, %v2366
    %v2595 = vpack.c.b16 %v2375, %v2371
    %v2596 = vpack.c.b16 %v2376, %v2372
    %v2597 = vpack.c.b16 %v2377, %v2373
    %v2598 = vpack.c.b16 %v2378, %v2374
    %v2599 = vpack.c.b16 %v2383, %v2379
    %v2600 = vpack.c.b16 %v2384, %v2380
    %v2601 = vpack.c.b16 %v2385, %v2381
    %v2602 = vpack.c.b16 %v2386, %v2382
    %v2603 = vpack.c.b16 %v2391, %v2387
    %v2604 = vpack.c.b16 %v2392, %v2388
    %v2605 = vpack.c.b16 %v2393, %v2389
    %v2606 = vpack.c.b16 %v2394, %v2390
    %v2607 = vpack.c.b16 %v2399, %v2395
    %v2608 = vpack.c.b16 %v2400, %v2396
    %v2609 = vpack.c.b16 %v2401, %v2397
    %v2610 = vpack.c.b16 %v2402, %v2398
    %v2611 = vpack.c.b16 %v2407, %v2403
    %v2612 = vpack.c.b16 %v2408, %v2404
    %v2613 = vpack.c.b16 %v2409, %v2405
    %v2614 = vpack.c.b16 %v2410, %v2406
    %v2615 = vpack.c.b16 %v2415, %v2411
    %v2616 = vpack.c.b16 %v2416, %v2412
    %v2617 = vpack.c.b16 %v2417, %v2413
    %v2618 = vpack.c.b16 %v2418, %v2414
    %v2619 = vpack.c.b16 %v2423, %v2419
    %v2620 = vpack.c.b16 %v2424, %v2420
    %v2621 = vpack.c.b16 %v2425, %v2421
    %v2622 = vpack.c.b16 %v2426, %v2422
    %v2623 = vpack.c.b16 %v2431, %v2427
    %v2624 = vpack.c.b16 %v2432, %v2428
    %v2625 = vpack.c.b16 %v2433, %v2429
    %v2626 = vpack.c.b16 %v2434, %v2430
    %v2627 = vpack.c.b16 %v2439, %v2435
    %v2628 = vpack.c.b16 %v2440, %v2436
    %v2629 = vpack.c.b16 %v2441, %v2437
    %v2630 = vpack.c.b16 %v2442, %v2438
    %v2631 = vpack.c.b16 %v2447, %v2443
    %v2632 = vpack.c.b16 %v2448, %v2444
    %v2633 = vpack.c.b16 %v2449, %v2445
    %v2634 = vpack.c.b16 %v2450, %v2446
    %v2635 = vpack.c.b16 %v2455, %v2451
    %v2636 = vpack.c.b16 %v2456, %v2452
    %v2637 = vpack.c.b16 %v2457, %v2453
    %v2638 = vpack.c.b16 %v2458, %v2454
    %v2639 = vpack.c.b16 %v2463, %v2459
    %v2640 = vpack.c.b16 %v2464, %v2460
    %v2641 = vpack.c.b16 %v2465, %v2461
    %v2642 = vpack.c.b16 %v2466, %v2462
    %v2643 = vpack.c.b16 %v2471, %v2467
    %v2644 = vpack.c.b16 %v2472, %v2468
    %v2645 = vpack.c.b16 %v2473, %v2469
    %v2646 = vpack.c.b16 %v2474, %v2470
    %v2647 = vpack.c.b16 %v2479, %v2475
    %v2648 = vpack.c.b16 %v2480, %v2476
    %v2649 = vpack.c.b16 %v2481, %v2477
    %v2650 = vpack.c.b16 %v2482, %v2478
    %v2651 = vpack.c.b16 %v2487, %v2483
    %v2652 = vpack.c.b16 %v2488, %v2484
    %v2653 = vpack.c.b16 %v2489, %v2485
    %v2654 = vpack.c.b16 %v2490, %v2486
    %v2655 = vpack.c.b16 %v2495, %v2491
    %v2656 = vpack.c.b16 %v2496, %v2492
    %v2657 = vpack.c.b16 %v2497, %v2493
    %v2658 = vpack.c.b16 %v2498, %v2494
    %v2659 = vpack.c.b16 %v2503, %v2499
    %v2660 = vpack.c.b16 %v2504, %v2500
    %v2661 = vpack.c.b16 %v2505, %v2501
    %v2662 = vpack.c.b16 %v2506, %v2502
    %v2663 = vpack.c.b16 %v2511, %v2507
    %v2664 = vpack.c.b16 %v2512, %v2508
    %v2665 = vpack.c.b16 %v2513, %v2509
    %v2666 = vpack.c.b16 %v2514, %v2510
    %v2667 = vpack.c.b16 %v2519, %v2515
    %v2668 = vpack.c.b16 %v2520, %v2516
    %v2669 = vpack.c.b16 %v2521, %v2517
    %v2670 = vpack.c.b16 %v2522, %v2518
    %v2671 = vpack.c.b16 %v2527, %v2523
    %v2672 = vpack.c.b16 %v2528, %v2524
    %v2673 = vpack.c.b16 %v2529, %v2525
    %v2674 = vpack.c.b16 %v2530, %v2526
    %v2675 = vpack.c.b16 %v2535, %v2531
    %v2676 = vpack.c.b16 %v2536, %v2532
    %v2677 = vpack.c.b16 %v2537, %v2533
    %v2678 = vpack.c.b16 %v2538, %v2534
    %v2679 = vpack.c.b16 %v2543, %v2539
    %v2680 = vpack.c.b16 %v2544, %v2540
    %v2681 = vpack.c.b16 %v2545, %v2541
    %v2682 = vpack.c.b16 %v2546, %v2542
    %v2683 = vpack.c.b16 %v2551, %v2547
    %v2684 = vpack.c.b16 %v2552, %v2548
    %v2685 = vpack.c.b16 %v2553, %v2549
    %v2686 = vpack.c.b16 %v2554, %v2550
    %v2687 = vpack.c.b16 %v2559, %v2555
    %v2688 = vpack.c.b16 %v2560, %v2556
    %v2689 = vpack.c.b16 %v2561, %v2557
    %v2690 = vpack.c.b16 %v2562, %v2558
    %2819 = vmatprep.subr.bf16.mxu0 %v2564
    %2820 = vmatpush1.bf16.msra.mxu0 %v2563
    %2821 = vmatprep.subr.bf16.mxu0 %v2568
    %2822 = vmatpush1.bf16.msra.mxu0 %v2567
    %2823 = vmatprep.subr.bf16.mxu0 %v2572
    %2824 = vmatpush1.bf16.msra.mxu0 %v2571
    %2825 = vmatprep.subr.bf16.mxu0 %v2576
    %2826 = vmatpush1.bf16.msra.mxu0 %v2575
    %2827 = vmatprep.subr.bf16.mxu0 %v2580
    %2828 = vmatpush1.bf16.msra.mxu0 %v2579
    %2829 = vmatprep.subr.bf16.mxu0 %v2584
    %2830 = vmatpush1.bf16.msra.mxu0 %v2583
    %2831 = vmatprep.subr.bf16.mxu0 %v2588
    %2832 = vmatpush1.bf16.msra.mxu0 %v2587
    %2833 = vmatprep.subr.bf16.mxu0 %v2592
    %2834 = vmatpush1.bf16.msra.mxu0 %v2591
    %2835 = vmatprep.subr.bf16.mxu0 %v2596
    %2836 = vmatpush1.bf16.msra.mxu0 %v2595
    %2837 = vmatprep.subr.bf16.mxu0 %v2600
    %2838 = vmatpush1.bf16.msra.mxu0 %v2599
    %2839 = vmatprep.subr.bf16.mxu0 %v2604
    %2840 = vmatpush1.bf16.msra.mxu0 %v2603
    %2841 = vmatprep.subr.bf16.mxu0 %v2608
    %2842 = vmatpush1.bf16.msra.mxu0 %v2607
    %2843 = vmatprep.subr.bf16.mxu0 %v2612
    %2844 = vmatpush1.bf16.msra.mxu0 %v2611
    %2845 = vmatprep.subr.bf16.mxu0 %v2616
    %2846 = vmatpush1.bf16.msra.mxu0 %v2615
    %2847 = vmatprep.subr.bf16.mxu0 %v2620
    %2848 = vmatpush1.bf16.msra.mxu0 %v2619
    %2849 = vmatprep.subr.bf16.mxu0 %v2624
    %2850 = vmatpush1.bf16.msra.mxu0 %v2623
    %2851 = vmatprep.mubr.bf16.mxu0 %v2026
    %2852 = vmatmul.mubr.bf16.gmra.mrb[0].mxu0 %v2025
    %v2853 = vpop.f32.mrb[0].mxu0
    %v2854 = vadd.f32 %v2162, %v2853
    %v2855 = vpop.f32.mrb[0].mxu0
    %v2856 = vadd.f32 %v2166, %v2855
    %v2857 = vpop.f32.mrb[0].mxu0
    %v2858 = vpop.f32.mrb[0].mxu0
    %2859 = vdwg.mxu0
    %2860 = vmatprep.subr.bf16.mxu0 %v2628
    %2861 = vmatpush1.bf16.msra.mxu0 %v2627
    %2862 = vmatprep.subr.bf16.mxu0 %v2632
    %2863 = vmatpush1.bf16.msra.mxu0 %v2631
    %2864 = vmatprep.subr.bf16.mxu0 %v2636
    %2865 = vmatpush1.bf16.msra.mxu0 %v2635
    %2866 = vmatprep.subr.bf16.mxu0 %v2640
    %2867 = vmatpush1.bf16.msra.mxu0 %v2639
    %2868 = vmatprep.subr.bf16.mxu0 %v2644
    %2869 = vmatpush1.bf16.msra.mxu0 %v2643
    %2870 = vmatprep.subr.bf16.mxu0 %v2648
    %2871 = vmatpush1.bf16.msra.mxu0 %v2647
    %2872 = vmatprep.subr.bf16.mxu0 %v2652
    %2873 = vmatpush1.bf16.msra.mxu0 %v2651
    %2874 = vmatprep.subr.bf16.mxu0 %v2656
    %2875 = vmatpush1.bf16.msra.mxu0 %v2655
    %2876 = vmatprep.subr.bf16.mxu0 %v2660
    %2877 = vmatpush1.bf16.msra.mxu0 %v2659
    %2878 = vmatprep.subr.bf16.mxu0 %v2664
    %2879 = vmatpush1.bf16.msra.mxu0 %v2663
    %2880 = vmatprep.subr.bf16.mxu0 %v2668
    %2881 = vmatpush1.bf16.msra.mxu0 %v2667
    %2882 = vmatprep.subr.bf16.mxu0 %v2672
    %2883 = vmatpush1.bf16.msra.mxu0 %v2671
    %2884 = vmatprep.subr.bf16.mxu0 %v2676
    %2885 = vmatpush1.bf16.msra.mxu0 %v2675
    %2886 = vmatprep.subr.bf16.mxu0 %v2680
    %2887 = vmatpush1.bf16.msra.mxu0 %v2679
    %2888 = vmatprep.subr.bf16.mxu0 %v2684
    %2889 = vmatpush1.bf16.msra.mxu0 %v2683
    %2890 = vmatprep.subr.bf16.mxu0 %v2688
    %2891 = vmatpush1.bf16.msra.mxu0 %v2687
    %2892 = vmatprep.mubr.bf16.mxu0 %v2028
    %2893 = vmatmul.mubr.bf16.gmra.mrb[0].mxu0 %v2027
    %v2894 = vpop.f32.mrb[0].mxu0
    %v2895 = vadd.f32 %v2854, %v2894
    %v2896 = vpop.f32.mrb[0].mxu0
    %v2897 = vadd.f32 %v2856, %v2896
    %v2898 = vpop.f32.mrb[0].mxu0
    %v2899 = vpop.f32.mrb[0].mxu0
    %2900 = vdwg.mxu0
    %2901 = vmatprep.subr.bf16.mxu0 %v2566
    %2902 = vmatpush1.bf16.msra.mxu0 %v2565
    %2903 = vmatprep.subr.bf16.mxu0 %v2570
    %2904 = vmatpush1.bf16.msra.mxu0 %v2569
    %2905 = vmatprep.subr.bf16.mxu0 %v2574
    %2906 = vmatpush1.bf16.msra.mxu0 %v2573
    %2907 = vmatprep.subr.bf16.mxu0 %v2578
    %2908 = vmatpush1.bf16.msra.mxu0 %v2577
    %2909 = vmatprep.subr.bf16.mxu0 %v2582
    %2910 = vmatpush1.bf16.msra.mxu0 %v2581
    %2911 = vmatprep.subr.bf16.mxu0 %v2586
    %2912 = vmatpush1.bf16.msra.mxu0 %v2585
    %2913 = vmatprep.subr.bf16.mxu0 %v2590
    %2914 = vmatpush1.bf16.msra.mxu0 %v2589
    %2915 = vmatprep.subr.bf16.mxu0 %v2594
    %2916 = vmatpush1.bf16.msra.mxu0 %v2593
    %2917 = vmatprep.subr.bf16.mxu0 %v2598
    %2918 = vmatpush1.bf16.msra.mxu0 %v2597
    %2919 = vmatprep.subr.bf16.mxu0 %v2602
    %2920 = vmatpush1.bf16.msra.mxu0 %v2601
    %2921 = vmatprep.subr.bf16.mxu0 %v2606
    %2922 = vmatpush1.bf16.msra.mxu0 %v2605
    %2923 = vmatprep.subr.bf16.mxu0 %v2610
    %2924 = vmatpush1.bf16.msra.mxu0 %v2609
    %2925 = vmatprep.subr.bf16.mxu0 %v2614
    %2926 = vmatpush1.bf16.msra.mxu0 %v2613
    %2927 = vmatprep.subr.bf16.mxu0 %v2618
    %2928 = vmatpush1.bf16.msra.mxu0 %v2617
    %2929 = vmatprep.subr.bf16.mxu0 %v2622
    %2930 = vmatpush1.bf16.msra.mxu0 %v2621
    %2931 = vmatprep.subr.bf16.mxu0 %v2626
    %2932 = vmatpush1.bf16.msra.mxu0 %v2625
    %2933 = vmatprep.mubr.bf16.mxu0 %v2026
    %2934 = vmatmul.mubr.bf16.gmra.mrb[0].mxu0 %v2025
    %v2935 = vpop.f32.mrb[0].mxu0
    %v2936 = vadd.f32 %v2170, %v2935
    %v2937 = vpop.f32.mrb[0].mxu0
    %v2938 = vadd.f32 %v2174, %v2937
    %v2939 = vpop.f32.mrb[0].mxu0
    %v2940 = vpop.f32.mrb[0].mxu0
    %2941 = vdwg.mxu0
    %2942 = vmatprep.subr.bf16.mxu0 %v2630
    %2943 = vmatpush1.bf16.msra.mxu0 %v2629
    %2944 = vmatprep.subr.bf16.mxu0 %v2634
    %2945 = vmatpush1.bf16.msra.mxu0 %v2633
    %2946 = vmatprep.subr.bf16.mxu0 %v2638
    %2947 = vmatpush1.bf16.msra.mxu0 %v2637
    %2948 = vmatprep.subr.bf16.mxu0 %v2642
    %2949 = vmatpush1.bf16.msra.mxu0 %v2641
    %2950 = vmatprep.subr.bf16.mxu0 %v2646
    %2951 = vmatpush1.bf16.msra.mxu0 %v2645
    %2952 = vmatprep.subr.bf16.mxu0 %v2650
    %2953 = vmatpush1.bf16.msra.mxu0 %v2649
    %2954 = vmatprep.subr.bf16.mxu0 %v2654
    %2955 = vmatpush1.bf16.msra.mxu0 %v2653
    %2956 = vmatprep.subr.bf16.mxu0 %v2658
    %2957 = vmatpush1.bf16.msra.mxu0 %v2657
    %2958 = vmatprep.subr.bf16.mxu0 %v2662
    %2959 = vmatpush1.bf16.msra.mxu0 %v2661
    %2960 = vmatprep.subr.bf16.mxu0 %v2666
    %2961 = vmatpush1.bf16.msra.mxu0 %v2665
    %2962 = vmatprep.subr.bf16.mxu0 %v2670
    %2963 = vmatpush1.bf16.msra.mxu0 %v2669
    %2964 = vmatprep.subr.bf16.mxu0 %v2674
    %2965 = vmatpush1.bf16.msra.mxu0 %v2673
    %2966 = vmatprep.subr.bf16.mxu0 %v2678
    %2967 = vmatpush1.bf16.msra.mxu0 %v2677
    %2968 = vmatprep.subr.bf16.mxu0 %v2682
    %2969 = vmatpush1.bf16.msra.mxu0 %v2681
    %2970 = vmatprep.subr.bf16.mxu0 %v2686
    %2971 = vmatpush1.bf16.msra.mxu0 %v2685
    %2972 = vmatprep.subr.bf16.mxu0 %v2690
    %2973 = vmatpush1.bf16.msra.mxu0 %v2689
    %2974 = vmatprep.mubr.bf16.mxu0 %v2028
    %2975 = vmatmul.mubr.bf16.gmra.mrb[0].mxu0 %v2027
    %v2976 = vpop.f32.mrb[0].mxu0
    %v2977 = vadd.f32 %v2936, %v2976
    %v2978 = vpop.f32.mrb[0].mxu0
    %v2979 = vadd.f32 %v2938, %v2978
    %v2980 = vpop.f32.mrb[0].mxu0
    %v2981 = vpop.f32.mrb[0].mxu0
    %2982 = vdwg.mxu0
    %v2983 = vmax.f32 %v2895, 0.0
    %v2984 = vmax.f32 %v2897, 0.0
    %v2985 = vmax.f32 %v2977, 0.0
    %v2986 = vmax.f32 %v2979, 0.0
    %v2987 = vpack.c.bf16 %v2983, %v2983
    %v2988 = vpack.c.bf16 %v2984, %v2984
    %v2989 = vpack.c.bf16 %v2985, %v2985
    %v2990 = vpack.c.bf16 %v2986, %v2986
    %v2991 = vld [vmem:[#allocation8] sm:$0xf]
    %v2992 = vld [vmem:[#allocation8 + $0x4] sm:$0xf]
    %v2993 = vld [vmem:[#allocation8 + $0x8] sm:$0xf]
    %v2994 = vld [vmem:[#allocation8 + $0xc] sm:$0xf]
    %v2995 = vld [vmem:[#allocation8 + $0x10] sm:$0xf]
    %v2996 = vld [vmem:[#allocation8 + $0x14] sm:$0xf]
    %v2997 = vld [vmem:[#allocation8 + $0x18] sm:$0xf]
    %v2998 = vld [vmem:[#allocation8 + $0x1c] sm:$0xf]
    %v2999 = vld [vmem:[#allocation8 + $0x20] sm:$0xf]
    %v3000 = vld [vmem:[#allocation8 + $0x24] sm:$0xf]
    %v3001 = vld [vmem:[#allocation8 + $0x28] sm:$0xf]
    %v3002 = vld [vmem:[#allocation8 + $0x2c] sm:$0xf]
    %v3003 = vld [vmem:[#allocation8 + $0x30] sm:$0xf]
    %v3004 = vld [vmem:[#allocation8 + $0x34] sm:$0xf]
    %v3005 = vld [vmem:[#allocation8 + $0x38] sm:$0xf]
    %v3006 = vld [vmem:[#allocation8 + $0x3c] sm:$0xf]
    %v3007 = vld [vmem:[#allocation8 + $0x40] sm:$0xf]
    %v3008 = vld [vmem:[#allocation8 + $0x44] sm:$0xf]
    %v3009 = vld [vmem:[#allocation8 + $0x48] sm:$0xf]
    %v3010 = vld [vmem:[#allocation8 + $0x4c] sm:$0xf]
    %v3011 = vld [vmem:[#allocation8 + $0x50] sm:$0xf]
    %v3012 = vld [vmem:[#allocation8 + $0x54] sm:$0xf]
    %v3013 = vld [vmem:[#allocation8 + $0x58] sm:$0xf]
    %v3014 = vld [vmem:[#allocation8 + $0x5c] sm:$0xf]
    %v3015 = vld [vmem:[#allocation8 + $0x60] sm:$0xf]
    %v3016 = vld [vmem:[#allocation8 + $0x64] sm:$0xf]
    %v3017 = vld [vmem:[#allocation8 + $0x68] sm:$0xf]
    %v3018 = vld [vmem:[#allocation8 + $0x6c] sm:$0xf]
    %v3019 = vld [vmem:[#allocation8 + $0x70] sm:$0xf]
    %v3020 = vld [vmem:[#allocation8 + $0x74] sm:$0xf]
    %v3021 = vld [vmem:[#allocation8 + $0x78] sm:$0xf]
    %v3022 = vld [vmem:[#allocation8 + $0x7c] sm:$0xf]
    %v3023 = vld [vmem:[#allocation8 + $0x80] sm:$0xf]
    %v3024 = vld [vmem:[#allocation8 + $0x84] sm:$0xf]
    %v3025 = vld [vmem:[#allocation8 + $0x88] sm:$0xf]
    %v3026 = vld [vmem:[#allocation8 + $0x8c] sm:$0xf]
    %v3027 = vld [vmem:[#allocation8 + $0x90] sm:$0xf]
    %v3028 = vld [vmem:[#allocation8 + $0x94] sm:$0xf]
    %v3029 = vld [vmem:[#allocation8 + $0x98] sm:$0xf]
    %v3030 = vld [vmem:[#allocation8 + $0x9c] sm:$0xf]
    %v3031 = vld [vmem:[#allocation8 + $0xa0] sm:$0xf]
    %v3032 = vld [vmem:[#allocation8 + $0xa4] sm:$0xf]
    %v3033 = vld [vmem:[#allocation8 + $0xa8] sm:$0xf]
    %v3034 = vld [vmem:[#allocation8 + $0xac] sm:$0xf]
    %v3035 = vld [vmem:[#allocation8 + $0xb0] sm:$0xf]
    %v3036 = vld [vmem:[#allocation8 + $0xb4] sm:$0xf]
    %v3037 = vld [vmem:[#allocation8 + $0xb8] sm:$0xf]
    %v3038 = vld [vmem:[#allocation8 + $0xbc] sm:$0xf]
    %v3039 = vld [vmem:[#allocation8 + $0xc0] sm:$0xf]
    %v3040 = vld [vmem:[#allocation8 + $0xc4] sm:$0xf]
    %v3041 = vld [vmem:[#allocation8 + $0xc8] sm:$0xf]
    %v3042 = vld [vmem:[#allocation8 + $0xcc] sm:$0xf]
    %v3043 = vld [vmem:[#allocation8 + $0xd0] sm:$0xf]
    %v3044 = vld [vmem:[#allocation8 + $0xd4] sm:$0xf]
    %v3045 = vld [vmem:[#allocation8 + $0xd8] sm:$0xf]
    %v3046 = vld [vmem:[#allocation8 + $0xdc] sm:$0xf]
    %v3047 = vld [vmem:[#allocation8 + $0xe0] sm:$0xf]
    %v3048 = vld [vmem:[#allocation8 + $0xe4] sm:$0xf]
    %v3049 = vld [vmem:[#allocation8 + $0xe8] sm:$0xf]
    %v3050 = vld [vmem:[#allocation8 + $0xec] sm:$0xf]
    %v3051 = vld [vmem:[#allocation8 + $0xf0] sm:$0xf]
    %v3052 = vld [vmem:[#allocation8 + $0xf4] sm:$0xf]
    %v3053 = vld [vmem:[#allocation8 + $0xf8] sm:$0xf]
    %v3054 = vld [vmem:[#allocation8 + $0xfc] sm:$0xf]
    %v3055 = vld [vmem:[%s6] sm:$0x1]
    %v3057 = vlaneseq
    %v3058 = vshrl.u32 %v3057, 7
    %v3059 = vsub.s32 0, %v3058
    %v3060 = vrot.slane %v3055, %v3059
    %v3126 = vunpack.c.l.b16 %v2991
    %v3127 = vunpack.c.l.b16 %v2992
    %v3128 = vunpack.c.l.b16 %v2993
    %v3129 = vunpack.c.l.b16 %v2994
    %v3130 = vunpack.c.l.b16 %v2995
    %v3131 = vunpack.c.l.b16 %v2996
    %v3132 = vunpack.c.l.b16 %v2997
    %v3133 = vunpack.c.l.b16 %v2998
    %v3134 = vunpack.c.l.b16 %v2999
    %v3135 = vunpack.c.l.b16 %v3000
    %v3136 = vunpack.c.l.b16 %v3001
    %v3137 = vunpack.c.l.b16 %v3002
    %v3138 = vunpack.c.l.b16 %v3003
    %v3139 = vunpack.c.l.b16 %v3004
    %v3140 = vunpack.c.l.b16 %v3005
    %v3141 = vunpack.c.l.b16 %v3006
    %v3142 = vunpack.c.l.b16 %v3007
    %v3143 = vunpack.c.l.b16 %v3008
    %v3144 = vunpack.c.l.b16 %v3009
    %v3145 = vunpack.c.l.b16 %v3010
    %v3146 = vunpack.c.l.b16 %v3011
    %v3147 = vunpack.c.l.b16 %v3012
    %v3148 = vunpack.c.l.b16 %v3013
    %v3149 = vunpack.c.l.b16 %v3014
    %v3150 = vunpack.c.l.b16 %v3015
    %v3151 = vunpack.c.l.b16 %v3016
    %v3152 = vunpack.c.l.b16 %v3017
    %v3153 = vunpack.c.l.b16 %v3018
    %v3154 = vunpack.c.l.b16 %v3019
    %v3155 = vunpack.c.l.b16 %v3020
    %v3156 = vunpack.c.l.b16 %v3021
    %v3157 = vunpack.c.l.b16 %v3022
    %v3158 = vunpack.c.l.b16 %v3023
    %v3159 = vunpack.c.l.b16 %v3024
    %v3160 = vunpack.c.l.b16 %v3025
    %v3161 = vunpack.c.l.b16 %v3026
    %v3162 = vunpack.c.l.b16 %v3027
    %v3163 = vunpack.c.l.b16 %v3028
    %v3164 = vunpack.c.l.b16 %v3029
    %v3165 = vunpack.c.l.b16 %v3030
    %v3166 = vunpack.c.l.b16 %v3031
    %v3167 = vunpack.c.l.b16 %v3032
    %v3168 = vunpack.c.l.b16 %v3033
    %v3169 = vunpack.c.l.b16 %v3034
    %v3170 = vunpack.c.l.b16 %v3035
    %v3171 = vunpack.c.l.b16 %v3036
    %v3172 = vunpack.c.l.b16 %v3037
    %v3173 = vunpack.c.l.b16 %v3038
    %v3174 = vunpack.c.l.b16 %v3039
    %v3175 = vunpack.c.l.b16 %v3040
    %v3176 = vunpack.c.l.b16 %v3041
    %v3177 = vunpack.c.l.b16 %v3042
    %v3178 = vunpack.c.l.b16 %v3043
    %v3179 = vunpack.c.l.b16 %v3044
    %v3180 = vunpack.c.l.b16 %v3045
    %v3181 = vunpack.c.l.b16 %v3046
    %v3182 = vunpack.c.l.b16 %v3047
    %v3183 = vunpack.c.l.b16 %v3048
    %v3184 = vunpack.c.l.b16 %v3049
    %v3185 = vunpack.c.l.b16 %v3050
    %v3186 = vunpack.c.l.b16 %v3051
    %v3187 = vunpack.c.l.b16 %v3052
    %v3188 = vunpack.c.l.b16 %v3053
    %v3189 = vunpack.c.l.b16 %v3054
    %v3190 = vpack.c.b16 %v3127, %v3126
    %v3191 = vpack.c.b16 %v3129, %v3128
    %v3192 = vpack.c.b16 %v3131, %v3130
    %v3193 = vpack.c.b16 %v3133, %v3132
    %v3194 = vpack.c.b16 %v3135, %v3134
    %v3195 = vpack.c.b16 %v3137, %v3136
    %v3196 = vpack.c.b16 %v3139, %v3138
    %v3197 = vpack.c.b16 %v3141, %v3140
    %v3198 = vpack.c.b16 %v3143, %v3142
    %v3199 = vpack.c.b16 %v3145, %v3144
    %v3200 = vpack.c.b16 %v3147, %v3146
    %v3201 = vpack.c.b16 %v3149, %v3148
    %v3202 = vpack.c.b16 %v3151, %v3150
    %v3203 = vpack.c.b16 %v3153, %v3152
    %v3204 = vpack.c.b16 %v3155, %v3154
    %v3205 = vpack.c.b16 %v3157, %v3156
    %v3206 = vpack.c.b16 %v3159, %v3158
    %v3207 = vpack.c.b16 %v3161, %v3160
    %v3208 = vpack.c.b16 %v3163, %v3162
    %v3209 = vpack.c.b16 %v3165, %v3164
    %v3210 = vpack.c.b16 %v3167, %v3166
    %v3211 = vpack.c.b16 %v3169, %v3168
    %v3212 = vpack.c.b16 %v3171, %v3170
    %v3213 = vpack.c.b16 %v3173, %v3172
    %v3214 = vpack.c.b16 %v3175, %v3174
    %v3215 = vpack.c.b16 %v3177, %v3176
    %v3216 = vpack.c.b16 %v3179, %v3178
    %v3217 = vpack.c.b16 %v3181, %v3180
    %v3218 = vpack.c.b16 %v3183, %v3182
    %v3219 = vpack.c.b16 %v3185, %v3184
    %v3220 = vpack.c.b16 %v3187, %v3186
    %v3221 = vpack.c.b16 %v3189, %v3188
    %3254 = vmatprep.subr.bf16.mxu0 0
    %3255 = vmatpush1.bf16.msra.mxu0 %v3190
    %3256 = vmatprep.subr.bf16.mxu0 0
    %3257 = vmatpush1.bf16.msra.mxu0 %v3191
    %3258 = vmatprep.subr.bf16.mxu0 0
    %3259 = vmatpush1.bf16.msra.mxu0 %v3192
    %3260 = vmatprep.subr.bf16.mxu0 0
    %3261 = vmatpush1.bf16.msra.mxu0 %v3193
    %3262 = vmatprep.subr.bf16.mxu0 0
    %3263 = vmatpush1.bf16.msra.mxu0 %v3194
    %3264 = vmatprep.subr.bf16.mxu0 0
    %3265 = vmatpush1.bf16.msra.mxu0 %v3195
    %3266 = vmatprep.subr.bf16.mxu0 0
    %3267 = vmatpush1.bf16.msra.mxu0 %v3196
    %3268 = vmatprep.subr.bf16.mxu0 0
    %3269 = vmatpush1.bf16.msra.mxu0 %v3197
    %3270 = vmatprep.subr.bf16.mxu0 0
    %3271 = vmatpush1.bf16.msra.mxu0 %v3198
    %3272 = vmatprep.subr.bf16.mxu0 0
    %3273 = vmatpush1.bf16.msra.mxu0 %v3199
    %3274 = vmatprep.subr.bf16.mxu0 0
    %3275 = vmatpush1.bf16.msra.mxu0 %v3200
    %3276 = vmatprep.subr.bf16.mxu0 0
    %3277 = vmatpush1.bf16.msra.mxu0 %v3201
    %3278 = vmatprep.subr.bf16.mxu0 0
    %3279 = vmatpush1.bf16.msra.mxu0 %v3202
    %3280 = vmatprep.subr.bf16.mxu0 0
    %3281 = vmatpush1.bf16.msra.mxu0 %v3203
    %3282 = vmatprep.subr.bf16.mxu0 0
    %3283 = vmatpush1.bf16.msra.mxu0 %v3204
    %3284 = vmatprep.subr.bf16.mxu0 0
    %3285 = vmatpush1.bf16.msra.mxu0 %v3205
    %3286 = vmatprep.mubr.bf16.mxu0 %v2988
    %3287 = vmatmul.mubr.bf16.gmra.mrb[0].mxu0 %v2987
    %v3288 = vpop.f32.mrb[0].mxu0
    %v3289 = vadd.f32 %v3060, %v3288
    %v3290 = vpop.f32.mrb[0].mxu0
    %v3291 = vpop.f32.mrb[0].mxu0
    %v3292 = vpop.f32.mrb[0].mxu0
    %3293 = vdwg.mxu0
    %3294 = vmatprep.subr.bf16.mxu0 0
    %3295 = vmatpush1.bf16.msra.mxu0 %v3206
    %3296 = vmatprep.subr.bf16.mxu0 0
    %3297 = vmatpush1.bf16.msra.mxu0 %v3207
    %3298 = vmatprep.subr.bf16.mxu0 0
    %3299 = vmatpush1.bf16.msra.mxu0 %v3208
    %3300 = vmatprep.subr.bf16.mxu0 0
    %3301 = vmatpush1.bf16.msra.mxu0 %v3209
    %3302 = vmatprep.subr.bf16.mxu0 0
    %3303 = vmatpush1.bf16.msra.mxu0 %v3210
    %3304 = vmatprep.subr.bf16.mxu0 0
    %3305 = vmatpush1.bf16.msra.mxu0 %v3211
    %3306 = vmatprep.subr.bf16.mxu0 0
    %3307 = vmatpush1.bf16.msra.mxu0 %v3212
    %3308 = vmatprep.subr.bf16.mxu0 0
    %3309 = vmatpush1.bf16.msra.mxu0 %v3213
    %3310 = vmatprep.subr.bf16.mxu0 0
    %3311 = vmatpush1.bf16.msra.mxu0 %v3214
    %3312 = vmatprep.subr.bf16.mxu0 0
    %3313 = vmatpush1.bf16.msra.mxu0 %v3215
    %3314 = vmatprep.subr.bf16.mxu0 0
    %3315 = vmatpush1.bf16.msra.mxu0 %v3216
    %3316 = vmatprep.subr.bf16.mxu0 0
    %3317 = vmatpush1.bf16.msra.mxu0 %v3217
    %3318 = vmatprep.subr.bf16.mxu0 0
    %3319 = vmatpush1.bf16.msra.mxu0 %v3218
    %3320 = vmatprep.subr.bf16.mxu0 0
    %3321 = vmatpush1.bf16.msra.mxu0 %v3219
    %3322 = vmatprep.subr.bf16.mxu0 0
    %3323 = vmatpush1.bf16.msra.mxu0 %v3220
    %3324 = vmatprep.subr.bf16.mxu0 0
    %3325 = vmatpush1.bf16.msra.mxu0 %v3221
    %3326 = vmatprep.mubr.bf16.mxu0 %v2990
    %3327 = vmatmul.mubr.bf16.gmra.mrb[0].mxu0 %v2989
    %v3328 = vpop.f32.mrb[0].mxu0
    %v3329 = vadd.f32 %v3289, %v3328
    %v3330 = vpop.f32.mrb[0].mxu0
    %v3331 = vpop.f32.mrb[0].mxu0
    %v3332 = vpop.f32.mrb[0].mxu0
    %3333 = vdwg.mxu0
    %3334 = vst [vmem:[#allocation10] sm:$0x3] %v3329
    // Predicated region
    $region46: #{tpu_custom_call.1} parent=1 // pred_check
      _
    $region47: #{tpu_custom_call.1} parent=1 // pred_check_branch
      %3336 = sbr.rel (0) target = $region49
    $region48: #{tpu_custom_call.1} parent=1 // pred_region
      %s3338 = ssub.s32 32, 32
      %3339 = vsyncadd [#allocation4], %s3338
      %s3341 = sshll.u32 [#allocation10], 4
      %s3342 = int_to_ptr.vmem [resolvable:$true] %s3341
      %3344 = dma.vmem_to_hbm [thread:$0]  %s3342, 32, %s7, [#allocation4]
    $region49: #{tpu_custom_call.1} parent=1 // pred_fallthru
      _
    // Predicated region
    $region50: #{tpu_custom_call.1} parent=1 // pred_check
      _
    $region51: #{tpu_custom_call.1} parent=1 // pred_check_branch
      %3346 = sbr.rel (0) target = $region53
    $region52: #{tpu_custom_call.1} parent=1 // pred_region
      %3347 = dma.done [#allocation4], 32
    $region53: #{tpu_custom_call.1} parent=1 // pred_fallthru
      _
    %3348 = vsyncpa [#allocation3], 1
    %3349 = vsyncpa [#allocation6], 1
    %3350 = vsyncpa [#allocation9], 1
    %3351 = vsyncpa [#allocation4], 1

</llo_original>
